<compile_context>
chip_gen: v6e
topology: v6e:2x2x1
jax: 0.10.0
libtpu: 0.0.40
codegen_flags: <defaults>
</compile_context>

<pallas_src>
import math

import jax
import jax.numpy as jnp
from jax import lax
from jax.experimental import pallas as pl
from jax.experimental.pallas import tpu as pltpu


# ----------------------------------------------------------------------------
# Pallas kernel: one VAMetric branch per grid step (branch axis = grid(2))
# ----------------------------------------------------------------------------
def va_branch_kernel(
    x_ref,      # (T*B, Dmax)  bf16  time-major, row = t*B + b, zero-padded feats
    h0_ref,     # (2, B, H)    f32   initial hidden states (layer0, layer1)
    wih0_ref,   # (Dmax, 3H)   bf16  GRU layer0 input weights (pre-transposed)
    whh0_ref,   # (H, 3H)      bf16
    bih0_ref,   # (1, 3H)      f32
    bhh0_ref,   # (1, 3H)      f32
    wih1_ref,   # (H, 3H)      bf16  GRU layer1
    whh1_ref,   # (H, 3H)      bf16
    bih1_ref,   # (1, 3H)      f32
    bhh1_ref,   # (1, 3H)      f32
    wconv_ref,  # (T, H, 6H)   bf16  Conv1d weight, wconv[t, c, o] = W[o, c, t]
    bconv_ref,  # (1, 6H)      f32
    w1c_ref,    # (6H, 4H)     bf16  fc1 columns for the conv part
    w1h1_ref,   # (H, 4H)      bf16  fc1 columns for hn[1]
    w1h0_ref,   # (H, 4H)      bf16  fc1 columns for hn[0]
    b1_ref,     # (1, 4H)      f32
    w2_ref,     # (4H, H)      bf16
    b2_ref,     # (1, H)       f32
    out_ref,    # (B, H)       f32
    gi_ref,     # scratch (T*B, 3H) f32 : hoisted input projection (reused l0/l1)
    y0_ref,     # scratch (T*B, H)  f32 : layer-0 hidden trajectory
):
    B = h0_ref.shape[1]
    H = h0_ref.shape[2]
    T = wconv_ref.shape[0]
    f32 = jnp.float32
    bf16 = jnp.bfloat16

    # ---- Hoisted layer-0 input projection: ONE (T*B, Din)@(Din, 3H) matmul, ----
    # ---- b_ih folded in.                                                    ----
    gi_ref[...] = (
        jnp.dot(x_ref[...], wih0_ref[...], preferred_element_type=f32)
        + bih0_ref[...])

    whh0 = whh0_ref[...]
    whh1 = whh1_ref[...]
    # Pre-broadcast recurrent biases once (not re-materialized every step).
    bhh0 = jnp.broadcast_to(bhh0_ref[...], (B, 3 * H))
    bhh1 = jnp.broadcast_to(bhh1_ref[...], (B, 3 * H))

    def hidden_step(gi, h_prev, whh, bhh):
        # Only this (B,H)@(H,3H) matmul remains on the serial dependence chain.
        gh = jnp.dot(h_prev.astype(bf16), whh, preferred_element_type=f32) + bhh
        # PyTorch GRU gate order: [r, z, n]; elementwise math stays f32.
        r = jax.nn.sigmoid(gi[:, 0:H] + gh[:, 0:H])
        z = jax.nn.sigmoid(gi[:, H:2 * H] + gh[:, H:2 * H])
        n = jnp.tanh(gi[:, 2 * H:3 * H] + r * gh[:, 2 * H:3 * H])
        return (1.0 - z) * n + z * h_prev

    # ---------------- layer-0 recurrence (stores trajectory) -----------------
    def l0_step(t, h):
        row = pl.multiple_of(t * B, B)
        h = hidden_step(gi_ref[pl.ds(row, B), :], h, whh0, bhh0)
        y0_ref[pl.ds(row, B), :] = h
        return h

    def l0_body(i, h):                       # explicit 2x unroll
        h = l0_step(2 * i, h)
        return l0_step(2 * i + 1, h)

    h_l0 = lax.fori_loop(0, T // 2, l0_body, h0_ref[0])
    if T % 2:                                # static tail (T odd)
        h_l0 = l0_step(T - 1, h_l0)

    # ---- Hoisted layer-1 input projection over the whole stored trajectory ----
    gi_ref[...] = (
        jnp.dot(y0_ref[...].astype(bf16), wih1_ref[...],
                preferred_element_type=f32)
        + bih1_ref[...])

    # ---------- layer-1 recurrence + Conv1d(kernel_size == T) accumulate ------
    def l1_step(t, h, acc):
        row = pl.multiple_of(t * B, B)
        h = hidden_step(gi_ref[pl.ds(row, B), :], h, whh1, bhh1)
        # conv[b, o] += sum_c y1[b, t, c] * W[o, c, t]  (off the serial chain)
        acc = acc + jnp.dot(h.astype(bf16), wconv_ref[t],
                            preferred_element_type=f32)
        return h, acc

    def l1_body(i, carry):                   # explicit 2x unroll
        h, acc = carry
        h, acc = l1_step(2 * i, h, acc)
        h, acc = l1_step(2 * i + 1, h, acc)
        return h, acc

    acc0 = jnp.zeros((B, 6 * H), f32)
    h_l1, acc = lax.fori_loop(0, T // 2, l1_body, (h0_ref[1], acc0))
    if T % 2:
        h_l1, acc = l1_step(T - 1, h_l1, acc)

    conv = acc + bconv_ref[...]              # (B, 6H)

    # fc1 over concat([conv, hn[1], hn[0]]) as a split-weight sum; sigmoid; fc2.
    pre1 = (jnp.dot(conv.astype(bf16), w1c_ref[...], preferred_element_type=f32)
            + jnp.dot(h_l1.astype(bf16), w1h1_ref[...], preferred_element_type=f32)
            + jnp.dot(h_l0.astype(bf16), w1h0_ref[...], preferred_element_type=f32)
            + b1_ref[...])
    s = jax.nn.sigmoid(pre1)                 # dropout(p=0.0) == identity
    out_ref[...] = (jnp.dot(s.astype(bf16), w2_ref[...], preferred_element_type=f32)
                    + b2_ref[...])


# ----------------------------------------------------------------------------
# One-time parameter packing (transposes / splits / bf16 casts OUT of the
# per-forward path).
# ----------------------------------------------------------------------------
def pack_branch_params(params_v, params_a, H):
    dv = params_v["wih0"].shape[1]
    da = params_a["wih0"].shape[1]
    dmax = max(dv, da)

    def prep(p, din):
        bf = lambda x: x.astype(jnp.bfloat16)
        f32 = lambda x: x.astype(jnp.float32)
        wih0 = jnp.zeros((dmax, 3 * H), jnp.float32).at[:din, :].set(p["wih0"].T)
        return [
            bf(wih0),                                   # wih0  (Dmax, 3H)
            bf(p["whh0"].T),                            # whh0  (H, 3H)
            f32(p["bih0"][None, :]),                    # bih0  (1, 3H)
            f32(p["bhh0"][None, :]),                    # bhh0
            bf(p["wih1"].T),                            # wih1  (H, 3H)
            bf(p["whh1"].T),                            # whh1
            f32(p["bih1"][None, :]),                    # bih1
            f32(p["bhh1"][None, :]),                    # bhh1
            bf(jnp.transpose(p["wconv"], (2, 1, 0))),   # wconv (T, H, 6H)
            f32(p["bconv"][None, :]),                   # bconv (1, 6H)
            bf(p["w1"][:, : 6 * H].T),                  # w1c   (6H, 4H)
            bf(p["w1"][:, 6 * H: 7 * H].T),             # w1h1  (H, 4H)
            bf(p["w1"][:, 7 * H:].T),                   # w1h0  (H, 4H)
            f32(p["b1"][None, :]),                      # b1    (1, 4H)
            bf(p["w2"].T),                              # w2    (4H, H)
            f32(p["b2"][None, :]),                      # b2    (1, H)
        ]

    pv = prep(params_v, dv)
    pa = prep(params_a, da)
    packed = [jnp.stack([a, b]) for a, b in zip(pv, pa)]   # leading branch axis
    return packed, dmax


def _vmem_limit_bytes(args, out_block_bytes, scratch_bytes):
    blk = sum(int(math.prod(a.shape[1:])) * a.dtype.itemsize for a in args)
    total = 2 * (blk + out_block_bytes) + scratch_bytes + (8 << 20)
    return int(min(max(total, 16 << 20), 64 << 20))


# ----------------------------------------------------------------------------
# Forward wrapper: only per-call input prep + one fused pallas_call.
# ----------------------------------------------------------------------------
def va_metric_forward(vfeat, afeat, h0_v, h0_a, packed, dmax):
    B, T, dv = vfeat.shape
    da = afeat.shape[2]
    H = h0_v.shape[2]

    def prep_x(x, d):
        xt = jnp.transpose(x, (1, 0, 2)).reshape(T * B, d)   # time-major, flat
        if d < dmax:
            xt = jnp.pad(xt, ((0, 0), (0, dmax - d)))        # zero feature pad
        return xt.astype(jnp.bfloat16)

    x2 = jnp.stack([prep_x(vfeat, dv), prep_x(afeat, da)])   # (2, T*B, Dmax)
    h0 = jnp.stack([h0_v, h0_a])                             # (2, 2, B, H)
    args = [x2, h0] + list(packed)

    def branch_spec(shape_rest):
        rest_rank = len(shape_rest)

        def idx(i, _r=rest_rank):
            return (i,) + (0,) * _r

        return pl.BlockSpec((None,) + tuple(shape_rest), idx)

    in_specs = [branch_spec(a.shape[1:]) for a in args]
    out_spec = pl.BlockSpec((None, B, H), lambda i: (i, 0, 0))

    scratch_shapes = [
        pltpu.VMEM((T * B, 3 * H), jnp.float32),   # hoisted input projections
        pltpu.VMEM((T * B, H), jnp.float32),       # layer-0 hidden trajectory
    ]
    scratch_bytes = (T * B * 3 * H + T * B * H) * 4
    vmem_limit = _vmem_limit_bytes(args, B * H * 4, scratch_bytes)

    out = pl.pallas_call(
        va_branch_kernel,
        out_shape=jax.ShapeDtypeStruct((2, B, H), jnp.float32),
        grid=(2,),
        in_specs=in_specs,
        out_specs=out_spec,
        scratch_shapes=scratch_shapes,
        compiler_params=pltpu.CompilerParams(
            dimension_semantics=("parallel",),      # branch axis -> 2 TCs on v7x
            vmem_limit_bytes=vmem_limit),
    )(*args)
    return out[0], out[1]


# ----------------------------------------------------------------------------
# Deterministic parameter init (shapes mirror the module, scaled down)
# ----------------------------------------------------------------------------
def _uniform(key, shape, a):
    return jax.random.uniform(key, shape, jnp.float32, -a, a)


def init_branch_params(key, din, H, T):
    ks = jax.random.split(key, 12)
    kg = 1.0 / math.sqrt(H)
    kc = 1.0 / math.sqrt(H * T)
    lim1 = math.sqrt(6.0 / (8 * H + 4 * H))   # xavier_uniform, fc1
    lim2 = math.sqrt(6.0 / (4 * H + H))       # xavier_uniform, fc2
    return {
        "wih0": _uniform(ks[0], (3 * H, din), kg),
        "whh0": _uniform(ks[1], (3 * H, H), kg),
        "bih0": _uniform(ks[2], (3 * H,), kg),
        "bhh0": _uniform(ks[3], (3 * H,), kg),
        "wih1": _uniform(ks[4], (3 * H, H), kg),
        "whh1": _uniform(ks[5], (3 * H, H), kg),
        "bih1": _uniform(ks[6], (3 * H,), kg),
        "bhh1": _uniform(ks[7], (3 * H,), kg),
        "wconv": _uniform(ks[8], (6 * H, H, T), kc),
        "bconv": _uniform(ks[9], (6 * H,), kc),
        "w1": _uniform(ks[10], (4 * H, 8 * H), lim1),
        "b1": jnp.zeros((4 * H,), jnp.float32),
        "w2": _uniform(ks[11], (H, 4 * H), lim2),
        "b2": jnp.zeros((H,), jnp.float32),
    }


# ----------------------------------------------------------------------------
# Pure-JAX reference mirroring the PyTorch forward AND the kernel's mixed
# precision (bf16 matmul inputs, f32 accumulation, f32 elementwise).
# ----------------------------------------------------------------------------
def branch_ref(x, h0, p, H, T):
    bf = jnp.bfloat16

    def mm(a, b):
        return jnp.dot(a.astype(bf), b.astype(bf),
                       preferred_element_type=jnp.float32)

    def cell(x_t, h, wih, whh, bih, bhh):
        gi = mm(x_t, wih.T) + bih
        gh = mm(h, whh.T) + bhh
        r = jax.nn.sigmoid(gi[:, :H] + gh[:, :H])
        z = jax.nn.sigmoid(gi[:, H:2 * H] + gh[:, H:2 * H])
        n = jnp.tanh(gi[:, 2 * H:] + r * gh[:, 2 * H:])
        return (1.0 - z) * n + z * h

    h_l0, h_l1 = h0[0], h0[1]
    ys = []
    for t in range(T):
        h_l0 = cell(x[:, t], h_l0, p["wih0"], p["whh0"], p["bih0"], p["bhh0"])
        h_l1 = cell(h_l0, h_l1, p["wih1"], p["whh1"], p["bih1"], p["bhh1"])
        ys.append(h_l1)
    y = jnp.stack(ys, axis=1)                               # (B, T, H)
    wconvt = jnp.transpose(p["wconv"], (2, 1, 0))           # (T, H, 6H)
    conv = sum(mm(y[:, t], wconvt[t]) for t in range(T)) + p["bconv"]
    w1 = p["w1"]
    pre = (mm(conv, w1[:, :6 * H].T) + mm(h_l1, w1[:, 6 * H:7 * H].T)
           + mm(h_l0, w1[:, 7 * H:].T) + p["b1"])
    s = jax.nn.sigmoid(pre)
    return mm(s, p["w2"].T) + p["b2"]


# ----------------------------------------------------------------------------
if __name__ == "__main__":
    # Small, shape-consistent configuration (original: H=128, T=120,
    # video din=1024, audio din=128).  Here: B=8 (sublane aligned), T=8,
    # H=32, DV=64, DA=32.
    B, T, H = 8, 8, 32
    DV, DA = 64, 32

    key = jax.random.PRNGKey(0)
    k_pv, k_pa, k_v, k_a, k_h0v, k_h0a = jax.random.split(key, 6)

    params_v = init_branch_params(k_pv, DV, H, T)
    params_a = init_branch_params(k_pa, DA, H, T)

    # One-time packing (transposes / splits / bf16 casts) — not per-forward.
    packed, dmax = pack_branch_params(params_v, params_a, H)

    vfeat = jax.random.normal(k_v, (B, T, DV), jnp.float32)
    afeat = jax.random.normal(k_a, (B, T, DA), jnp.float32)
    # deterministic stand-in for torch.randn initial hidden states
    h0_v = jax.random.normal(k_h0v, (2, B, H), jnp.float32)
    h0_a = jax.random.normal(k_h0a, (2, B, H), jnp.float32)

    v_out, a_out = va_metric_forward(vfeat, afeat, h0_v, h0_a, packed, dmax)
    jax.block_until_ready((v_out, a_out))

    v_ref = branch_ref(vfeat, h0_v, params_v, H, T)
    a_ref = branch_ref(afeat, h0_a, params_a, H, T)

    assert v_out.shape == (B, H) and a_out.shape == (B, H)
    assert jnp.allclose(v_out, v_ref, atol=1e-2, rtol=1e-2), "video branch mismatch"
    assert jnp.allclose(a_out, a_ref, atol=1e-2, rtol=1e-2), "audio branch mismatch"

    print("KERNEL_OK")
</pallas_src>

<mosaic_0001>
module attributes {stable_mosaic.version = 11 : i64} {
  func.func @va_branch_kernel(%arg0: i32, %arg1: memref<1x64x64xbf16, #tpu.memory_space<vmem>>, %arg2: memref<1x2x8x32xf32, #tpu.memory_space<vmem>>, %arg3: memref<1x64x96xbf16, #tpu.memory_space<vmem>>, %arg4: memref<1x32x96xbf16, #tpu.memory_space<vmem>>, %arg5: memref<1x1x96xf32, #tpu.memory_space<vmem>>, %arg6: memref<1x1x96xf32, #tpu.memory_space<vmem>>, %arg7: memref<1x32x96xbf16, #tpu.memory_space<vmem>>, %arg8: memref<1x32x96xbf16, #tpu.memory_space<vmem>>, %arg9: memref<1x1x96xf32, #tpu.memory_space<vmem>>, %arg10: memref<1x1x96xf32, #tpu.memory_space<vmem>>, %arg11: memref<1x8x32x192xbf16, #tpu.memory_space<vmem>>, %arg12: memref<1x1x192xf32, #tpu.memory_space<vmem>>, %arg13: memref<1x192x128xbf16, #tpu.memory_space<vmem>>, %arg14: memref<1x32x128xbf16, #tpu.memory_space<vmem>>, %arg15: memref<1x32x128xbf16, #tpu.memory_space<vmem>>, %arg16: memref<1x1x128xf32, #tpu.memory_space<vmem>>, %arg17: memref<1x128x32xbf16, #tpu.memory_space<vmem>>, %arg18: memref<1x1x32xf32, #tpu.memory_space<vmem>>, %arg19: memref<1x8x32xf32, #tpu.memory_space<vmem>>, %arg20: memref<64x96xf32, #tpu.memory_space<vmem>>, %arg21: memref<64x32xf32, #tpu.memory_space<vmem>>) attributes {dimension_semantics = [#tpu.dimension_semantics<parallel>], iteration_bounds = array<i64: 2>, scalar_prefetch = 0 : i64, scratch_operands = 2 : i64, tpu.core_type = #tpu.core_type<tc>, window_params = [{transform_indices = @transform_0, window_bounds = array<i64: 1, 64, 64>}, {transform_indices = @transform_1, window_bounds = array<i64: 1, 2, 8, 32>}, {transform_indices = @transform_2, window_bounds = array<i64: 1, 64, 96>}, {transform_indices = @transform_3, window_bounds = array<i64: 1, 32, 96>}, {transform_indices = @transform_4, window_bounds = array<i64: 1, 1, 96>}, {transform_indices = @transform_5, window_bounds = array<i64: 1, 1, 96>}, {transform_indices = @transform_6, window_bounds = array<i64: 1, 32, 96>}, {transform_indices = @transform_7, window_bounds = array<i64: 1, 32, 96>}, {transform_indices = @transform_8, window_bounds = array<i64: 1, 1, 96>}, {transform_indices = @transform_9, window_bounds = array<i64: 1, 1, 96>}, {transform_indices = @transform_10, window_bounds = array<i64: 1, 8, 32, 192>}, {transform_indices = @transform_11, window_bounds = array<i64: 1, 1, 192>}, {transform_indices = @transform_12, window_bounds = array<i64: 1, 192, 128>}, {transform_indices = @transform_13, window_bounds = array<i64: 1, 32, 128>}, {transform_indices = @transform_14, window_bounds = array<i64: 1, 32, 128>}, {transform_indices = @transform_15, window_bounds = array<i64: 1, 1, 128>}, {transform_indices = @transform_16, window_bounds = array<i64: 1, 128, 32>}, {transform_indices = @transform_17, window_bounds = array<i64: 1, 1, 32>}, {transform_indices = @transform_18, window_bounds = array<i64: 1, 8, 32>}]} {
    %c0 = arith.constant 0 : index
    %c0_0 = arith.constant 0 : index
    %c0_1 = arith.constant 0 : index
    %0 = vector.load %arg1[%c0, %c0_0, %c0_1] : memref<1x64x64xbf16, #tpu.memory_space<vmem>>, vector<1x64x64xbf16>
    %1 = vector.shape_cast %0 : vector<1x64x64xbf16> to vector<64x64xbf16>
    %c0_2 = arith.constant 0 : index
    %c0_3 = arith.constant 0 : index
    %c0_4 = arith.constant 0 : index
    %2 = vector.load %arg3[%c0_2, %c0_3, %c0_4] : memref<1x64x96xbf16, #tpu.memory_space<vmem>>, vector<1x64x96xbf16>
    %3 = vector.shape_cast %2 : vector<1x64x96xbf16> to vector<64x96xbf16>
    %cst = arith.constant dense<0.000000e+00> : vector<64x96xf32>
    %4 = tpu.matmul %1, %3, %cst {dimension_numbers = #tpu.dot_dimension_numbers<[1], [0], [0], [1], [0, 0, 1, 1], [], []>} : vector<64x64xbf16>, vector<64x96xbf16>, vector<64x96xf32> -> vector<64x96xf32>
    %c0_5 = arith.constant 0 : index
    %c0_6 = arith.constant 0 : index
    %c0_7 = arith.constant 0 : index
    %5 = vector.load %arg5[%c0_5, %c0_6, %c0_7] : memref<1x1x96xf32, #tpu.memory_space<vmem>>, vector<1x1x96xf32>
    %6 = vector.shape_cast %5 : vector<1x1x96xf32> to vector<1x96xf32>
    %7 = vector.broadcast %6 : vector<1x96xf32> to vector<64x96xf32>
    %8 = arith.addf %4, %7 : vector<64x96xf32>
    %c0_8 = arith.constant 0 : index
    %c0_9 = arith.constant 0 : index
    %9 = vector.load %arg20[%c0_8, %c0_9] : memref<64x96xf32, #tpu.memory_space<vmem>>, vector<64x96xf32>
    tpu.vector_store %arg20[%c0_8, %c0_9], %8 {strides = array<i32>} : memref<64x96xf32, #tpu.memory_space<vmem>>, vector<64x96xf32>,
    %c0_10 = arith.constant 0 : index
    %c0_11 = arith.constant 0 : index
    %c0_12 = arith.constant 0 : index
    %10 = vector.load %arg4[%c0_10, %c0_11, %c0_12] : memref<1x32x96xbf16, #tpu.memory_space<vmem>>, vector<1x32x96xbf16>
    %11 = vector.shape_cast %10 : vector<1x32x96xbf16> to vector<32x96xbf16>
    %c0_13 = arith.constant 0 : index
    %c0_14 = arith.constant 0 : index
    %c0_15 = arith.constant 0 : index
    %12 = vector.load %arg8[%c0_13, %c0_14, %c0_15] : memref<1x32x96xbf16, #tpu.memory_space<vmem>>, vector<1x32x96xbf16>
    %13 = vector.shape_cast %12 : vector<1x32x96xbf16> to vector<32x96xbf16>
    %c0_16 = arith.constant 0 : index
    %c0_17 = arith.constant 0 : index
    %c0_18 = arith.constant 0 : index
    %14 = vector.load %arg6[%c0_16, %c0_17, %c0_18] : memref<1x1x96xf32, #tpu.memory_space<vmem>>, vector<1x1x96xf32>
    %15 = vector.shape_cast %14 : vector<1x1x96xf32> to vector<1x96xf32>
    %16 = vector.shape_cast %15 : vector<1x96xf32> to vector<1x96xf32>
    %17 = vector.broadcast %16 : vector<1x96xf32> to vector<8x96xf32>
    %c0_19 = arith.constant 0 : index
    %c0_20 = arith.constant 0 : index
    %c0_21 = arith.constant 0 : index
    %18 = vector.load %arg10[%c0_19, %c0_20, %c0_21] : memref<1x1x96xf32, #tpu.memory_space<vmem>>, vector<1x1x96xf32>
    %19 = vector.shape_cast %18 : vector<1x1x96xf32> to vector<1x96xf32>
    %20 = vector.shape_cast %19 : vector<1x96xf32> to vector<1x96xf32>
    %21 = vector.broadcast %20 : vector<1x96xf32> to vector<8x96xf32>
    %c0_22 = arith.constant 0 : index
    %c0_23 = arith.constant 0 : index
    %c0_24 = arith.constant 0 : index
    %c0_25 = arith.constant 0 : index
    %22 = vector.load %arg2[%c0_22, %c0_23, %c0_24, %c0_25] : memref<1x2x8x32xf32, #tpu.memory_space<vmem>>, vector<1x1x8x32xf32>
    %23 = vector.shape_cast %22 : vector<1x1x8x32xf32> to vector<8x32xf32>
    %c0_i32 = arith.constant 0 : i32
    %c4_i32 = arith.constant 4 : i32
    %24 = arith.addi %c0_i32, %c4_i32 : i32
    %c1_i32 = arith.constant 1 : i32
    %25 = scf.for %arg22 = %c0_i32 to %24 step %c1_i32 iter_args(%arg23 = %23) -> (vector<8x32xf32>)  : i32 {
      %c2_i32 = arith.constant 2 : i32
      %79 = arith.muli %c2_i32, %arg22 : i32
      %c8_i32 = arith.constant 8 : i32
      %80 = arith.muli %79, %c8_i32 : i32
      %81 = tpu.assume_multiple %80, 8 : i32
      %82 = arith.index_cast %81 : i32 to index
      %c0_75 = arith.constant 0 : index
      %83 = vector.load %arg20[%82, %c0_75] : memref<64x96xf32, #tpu.memory_space<vmem>>, vector<8x96xf32>
      %84 = arith.truncf %arg23 : vector<8x32xf32> to vector<8x32xbf16>
      %cst_76 = arith.constant dense<0.000000e+00> : vector<8x96xf32>
      %85 = tpu.matmul %84, %11, %cst_76 {dimension_numbers = #tpu.dot_dimension_numbers<[1], [0], [0], [1], [0, 0, 1, 1], [], []>} : vector<8x32xbf16>, vector<32x96xbf16>, vector<8x96xf32> -> vector<8x96xf32>
      %86 = arith.addf %85, %17 : vector<8x96xf32>
      %87 = vector.extract_strided_slice %83 {offsets = [0, 0], sizes = [8, 32], strides = [1, 1]} : vector<8x96xf32> to vector<8x32xf32>
      %88 = vector.extract_strided_slice %86 {offsets = [0, 0], sizes = [8, 32], strides = [1, 1]} : vector<8x96xf32> to vector<8x32xf32>
      %89 = arith.addf %87, %88 : vector<8x32xf32>
      %90 = arith.negf %89 : vector<8x32xf32>
      %91 = math.exp %90 : vector<8x32xf32>
      %cst_77 = arith.constant 1.000000e+00 : f32
      %92 = vector.broadcast %cst_77 : f32 to vector<8x32xf32>
      %93 = arith.addf %92, %91 : vector<8x32xf32>
      %94 = arith.divf %92, %93 : vector<8x32xf32>
      %95 = vector.extract_strided_slice %83 {offsets = [0, 32], sizes = [8, 32], strides = [1, 1]} : vector<8x96xf32> to vector<8x32xf32>
      %96 = vector.extract_strided_slice %86 {offsets = [0, 32], sizes = [8, 32], strides = [1, 1]} : vector<8x96xf32> to vector<8x32xf32>
      %97 = arith.addf %95, %96 : vector<8x32xf32>
      %98 = arith.negf %97 : vector<8x32xf32>
      %99 = math.exp %98 : vector<8x32xf32>
      %cst_78 = arith.constant 1.000000e+00 : f32
      %100 = vector.broadcast %cst_78 : f32 to vector<8x32xf32>
      %101 = arith.addf %100, %99 : vector<8x32xf32>
      %102 = arith.divf %100, %101 : vector<8x32xf32>
      %103 = vector.extract_strided_slice %83 {offsets = [0, 64], sizes = [8, 32], strides = [1, 1]} : vector<8x96xf32> to vector<8x32xf32>
      %104 = vector.extract_strided_slice %86 {offsets = [0, 64], sizes = [8, 32], strides = [1, 1]} : vector<8x96xf32> to vector<8x32xf32>
      %105 = arith.mulf %94, %104 : vector<8x32xf32>
      %106 = arith.addf %103, %105 : vector<8x32xf32>
      %107 = math.tanh %106 : vector<8x32xf32>
      %cst_79 = arith.constant 1.000000e+00 : f32
      %108 = vector.broadcast %cst_79 : f32 to vector<8x32xf32>
      %109 = arith.subf %108, %102 : vector<8x32xf32>
      %110 = arith.mulf %109, %107 : vector<8x32xf32>
      %111 = arith.mulf %102, %arg23 : vector<8x32xf32>
      %112 = arith.addf %110, %111 : vector<8x32xf32>
      %113 = arith.index_cast %81 : i32 to index
      %c0_80 = arith.constant 0 : index
      %114 = vector.load %arg21[%113, %c0_80] : memref<64x32xf32, #tpu.memory_space<vmem>>, vector<8x32xf32>
      tpu.vector_store %arg21[%113, %c0_80], %112 {strides = array<i32>} : memref<64x32xf32, #tpu.memory_space<vmem>>, vector<8x32xf32>,
      %c2_i32_81 = arith.constant 2 : i32
      %115 = arith.muli %c2_i32_81, %arg22 : i32
      %c1_i32_82 = arith.constant 1 : i32
      %116 = arith.addi %115, %c1_i32_82 : i32
      %c8_i32_83 = arith.constant 8 : i32
      %117 = arith.muli %116, %c8_i32_83 : i32
      %118 = tpu.assume_multiple %117, 8 : i32
      %119 = arith.index_cast %118 : i32 to index
      %c0_84 = arith.constant 0 : index
      %120 = vector.load %arg20[%119, %c0_84] : memref<64x96xf32, #tpu.memory_space<vmem>>, vector<8x96xf32>
      %121 = arith.truncf %112 : vector<8x32xf32> to vector<8x32xbf16>
      %cst_85 = arith.constant dense<0.000000e+00> : vector<8x96xf32>
      %122 = tpu.matmul %121, %11, %cst_85 {dimension_numbers = #tpu.dot_dimension_numbers<[1], [0], [0], [1], [0, 0, 1, 1], [], []>} : vector<8x32xbf16>, vector<32x96xbf16>, vector<8x96xf32> -> vector<8x96xf32>
      %123 = arith.addf %122, %17 : vector<8x96xf32>
      %124 = vector.extract_strided_slice %120 {offsets = [0, 0], sizes = [8, 32], strides = [1, 1]} : vector<8x96xf32> to vector<8x32xf32>
      %125 = vector.extract_strided_slice %123 {offsets = [0, 0], sizes = [8, 32], strides = [1, 1]} : vector<8x96xf32> to vector<8x32xf32>
      %126 = arith.addf %124, %125 : vector<8x32xf32>
      %127 = arith.negf %126 : vector<8x32xf32>
      %128 = math.exp %127 : vector<8x32xf32>
      %cst_86 = arith.constant 1.000000e+00 : f32
      %129 = vector.broadcast %cst_86 : f32 to vector<8x32xf32>
      %130 = arith.addf %129, %128 : vector<8x32xf32>
      %131 = arith.divf %129, %130 : vector<8x32xf32>
      %132 = vector.extract_strided_slice %120 {offsets = [0, 32], sizes = [8, 32], strides = [1, 1]} : vector<8x96xf32> to vector<8x32xf32>
      %133 = vector.extract_strided_slice %123 {offsets = [0, 32], sizes = [8, 32], strides = [1, 1]} : vector<8x96xf32> to vector<8x32xf32>
      %134 = arith.addf %132, %133 : vector<8x32xf32>
      %135 = arith.negf %134 : vector<8x32xf32>
      %136 = math.exp %135 : vector<8x32xf32>
      %cst_87 = arith.constant 1.000000e+00 : f32
      %137 = vector.broadcast %cst_87 : f32 to vector<8x32xf32>
      %138 = arith.addf %137, %136 : vector<8x32xf32>
      %139 = arith.divf %137, %138 : vector<8x32xf32>
      %140 = vector.extract_strided_slice %120 {offsets = [0, 64], sizes = [8, 32], strides = [1, 1]} : vector<8x96xf32> to vector<8x32xf32>
      %141 = vector.extract_strided_slice %123 {offsets = [0, 64], sizes = [8, 32], strides = [1, 1]} : vector<8x96xf32> to vector<8x32xf32>
      %142 = arith.mulf %131, %141 : vector<8x32xf32>
      %143 = arith.addf %140, %142 : vector<8x32xf32>
      %144 = math.tanh %143 : vector<8x32xf32>
      %cst_88 = arith.constant 1.000000e+00 : f32
      %145 = vector.broadcast %cst_88 : f32 to vector<8x32xf32>
      %146 = arith.subf %145, %139 : vector<8x32xf32>
      %147 = arith.mulf %146, %144 : vector<8x32xf32>
      %148 = arith.mulf %139, %112 : vector<8x32xf32>
      %149 = arith.addf %147, %148 : vector<8x32xf32>
      %150 = arith.index_cast %118 : i32 to index
      %c0_89 = arith.constant 0 : index
      %151 = vector.load %arg21[%150, %c0_89] : memref<64x32xf32, #tpu.memory_space<vmem>>, vector<8x32xf32>
      tpu.vector_store %arg21[%150, %c0_89], %149 {strides = array<i32>} : memref<64x32xf32, #tpu.memory_space<vmem>>, vector<8x32xf32>,
      scf.yield %149 : vector<8x32xf32>
    }
    %c4_i32_26 = arith.constant 4 : i32
    %c0_27 = arith.constant 0 : index
    %c0_28 = arith.constant 0 : index
    %26 = vector.load %arg21[%c0_27, %c0_28] : memref<64x32xf32, #tpu.memory_space<vmem>>, vector<64x32xf32>
    %27 = arith.truncf %26 : vector<64x32xf32> to vector<64x32xbf16>
    %c0_29 = arith.constant 0 : index
    %c0_30 = arith.constant 0 : index
    %c0_31 = arith.constant 0 : index
    %28 = vector.load %arg7[%c0_29, %c0_30, %c0_31] : memref<1x32x96xbf16, #tpu.memory_space<vmem>>, vector<1x32x96xbf16>
    %29 = vector.shape_cast %28 : vector<1x32x96xbf16> to vector<32x96xbf16>
    %cst_32 = arith.constant dense<0.000000e+00> : vector<64x96xf32>
    %30 = tpu.matmul %27, %29, %cst_32 {dimension_numbers = #tpu.dot_dimension_numbers<[1], [0], [0], [1], [0, 0, 1, 1], [], []>} : vector<64x32xbf16>, vector<32x96xbf16>, vector<64x96xf32> -> vector<64x96xf32>
    %c0_33 = arith.constant 0 : index
    %c0_34 = arith.constant 0 : index
    %c0_35 = arith.constant 0 : index
    %31 = vector.load %arg9[%c0_33, %c0_34, %c0_35] : memref<1x1x96xf32, #tpu.memory_space<vmem>>, vector<1x1x96xf32>
    %32 = vector.shape_cast %31 : vector<1x1x96xf32> to vector<1x96xf32>
    %33 = vector.broadcast %32 : vector<1x96xf32> to vector<64x96xf32>
    %34 = arith.addf %30, %33 : vector<64x96xf32>
    %c0_36 = arith.constant 0 : index
    %c0_37 = arith.constant 0 : index
    %35 = vector.load %arg20[%c0_36, %c0_37] : memref<64x96xf32, #tpu.memory_space<vmem>>, vector<64x96xf32>
    tpu.vector_store %arg20[%c0_36, %c0_37], %34 {strides = array<i32>} : memref<64x96xf32, #tpu.memory_space<vmem>>, vector<64x96xf32>,
    %cst_38 = arith.constant 0.000000e+00 : f32
    %36 = vector.broadcast %cst_38 : f32 to vector<8x192xf32>
    %c0_39 = arith.constant 0 : index
    %c1 = arith.constant 1 : index
    %c0_40 = arith.constant 0 : index
    %c0_41 = arith.constant 0 : index
    %37 = vector.load %arg2[%c0_39, %c1, %c0_40, %c0_41] : memref<1x2x8x32xf32, #tpu.memory_space<vmem>>, vector<1x1x8x32xf32>
    %38 = vector.shape_cast %37 : vector<1x1x8x32xf32> to vector<8x32xf32>
    %c0_i32_42 = arith.constant 0 : i32
    %c4_i32_43 = arith.constant 4 : i32
    %39 = arith.addi %c0_i32_42, %c4_i32_43 : i32
    %c1_i32_44 = arith.constant 1 : i32
    %40:2 = scf.for %arg22 = %c0_i32_42 to %39 step %c1_i32_44 iter_args(%arg23 = %38, %arg24 = %36) -> (vector<8x32xf32>, vector<8x192xf32>)  : i32 {
      %c2_i32 = arith.constant 2 : i32
      %79 = arith.muli %c2_i32, %arg22 : i32
      %c8_i32 = arith.constant 8 : i32
      %80 = arith.muli %79, %c8_i32 : i32
      %81 = tpu.assume_multiple %80, 8 : i32
      %82 = arith.index_cast %81 : i32 to index
      %c0_75 = arith.constant 0 : index
      %83 = vector.load %arg20[%82, %c0_75] : memref<64x96xf32, #tpu.memory_space<vmem>>, vector<8x96xf32>
      %84 = arith.truncf %arg23 : vector<8x32xf32> to vector<8x32xbf16>
      %cst_76 = arith.constant dense<0.000000e+00> : vector<8x96xf32>
      %85 = tpu.matmul %84, %13, %cst_76 {dimension_numbers = #tpu.dot_dimension_numbers<[1], [0], [0], [1], [0, 0, 1, 1], [], []>} : vector<8x32xbf16>, vector<32x96xbf16>, vector<8x96xf32> -> vector<8x96xf32>
      %86 = arith.addf %85, %21 : vector<8x96xf32>
      %87 = vector.extract_strided_slice %83 {offsets = [0, 0], sizes = [8, 32], strides = [1, 1]} : vector<8x96xf32> to vector<8x32xf32>
      %88 = vector.extract_strided_slice %86 {offsets = [0, 0], sizes = [8, 32], strides = [1, 1]} : vector<8x96xf32> to vector<8x32xf32>
      %89 = arith.addf %87, %88 : vector<8x32xf32>
      %90 = arith.negf %89 : vector<8x32xf32>
      %91 = math.exp %90 : vector<8x32xf32>
      %cst_77 = arith.constant 1.000000e+00 : f32
      %92 = vector.broadcast %cst_77 : f32 to vector<8x32xf32>
      %93 = arith.addf %92, %91 : vector<8x32xf32>
      %94 = arith.divf %92, %93 : vector<8x32xf32>
      %95 = vector.extract_strided_slice %83 {offsets = [0, 32], sizes = [8, 32], strides = [1, 1]} : vector<8x96xf32> to vector<8x32xf32>
      %96 = vector.extract_strided_slice %86 {offsets = [0, 32], sizes = [8, 32], strides = [1, 1]} : vector<8x96xf32> to vector<8x32xf32>
      %97 = arith.addf %95, %96 : vector<8x32xf32>
      %98 = arith.negf %97 : vector<8x32xf32>
      %99 = math.exp %98 : vector<8x32xf32>
      %cst_78 = arith.constant 1.000000e+00 : f32
      %100 = vector.broadcast %cst_78 : f32 to vector<8x32xf32>
      %101 = arith.addf %100, %99 : vector<8x32xf32>
      %102 = arith.divf %100, %101 : vector<8x32xf32>
      %103 = vector.extract_strided_slice %83 {offsets = [0, 64], sizes = [8, 32], strides = [1, 1]} : vector<8x96xf32> to vector<8x32xf32>
      %104 = vector.extract_strided_slice %86 {offsets = [0, 64], sizes = [8, 32], strides = [1, 1]} : vector<8x96xf32> to vector<8x32xf32>
      %105 = arith.mulf %94, %104 : vector<8x32xf32>
      %106 = arith.addf %103, %105 : vector<8x32xf32>
      %107 = math.tanh %106 : vector<8x32xf32>
      %cst_79 = arith.constant 1.000000e+00 : f32
      %108 = vector.broadcast %cst_79 : f32 to vector<8x32xf32>
      %109 = arith.subf %108, %102 : vector<8x32xf32>
      %110 = arith.mulf %109, %107 : vector<8x32xf32>
      %111 = arith.mulf %102, %arg23 : vector<8x32xf32>
      %112 = arith.addf %110, %111 : vector<8x32xf32>
      %113 = arith.truncf %112 : vector<8x32xf32> to vector<8x32xbf16>
      %c0_80 = arith.constant 0 : index
      %114 = arith.index_cast %79 : i32 to index
      %c0_81 = arith.constant 0 : index
      %c0_82 = arith.constant 0 : index
      %115 = vector.load %arg11[%c0_80, %114, %c0_81, %c0_82] : memref<1x8x32x192xbf16, #tpu.memory_space<vmem>>, vector<1x1x32x192xbf16>
      %116 = vector.shape_cast %115 : vector<1x1x32x192xbf16> to vector<32x192xbf16>
      %cst_83 = arith.constant dense<0.000000e+00> : vector<8x192xf32>
      %117 = tpu.matmul %113, %116, %cst_83 {dimension_numbers = #tpu.dot_dimension_numbers<[1], [0], [0], [1], [0, 0, 1, 1], [], []>} : vector<8x32xbf16>, vector<32x192xbf16>, vector<8x192xf32> -> vector<8x192xf32>
      %118 = arith.addf %arg24, %117 : vector<8x192xf32>
      %c2_i32_84 = arith.constant 2 : i32
      %119 = arith.muli %c2_i32_84, %arg22 : i32
      %c1_i32_85 = arith.constant 1 : i32
      %120 = arith.addi %119, %c1_i32_85 : i32
      %c8_i32_86 = arith.constant 8 : i32
      %121 = arith.muli %120, %c8_i32_86 : i32
      %122 = tpu.assume_multiple %121, 8 : i32
      %123 = arith.index_cast %122 : i32 to index
      %c0_87 = arith.constant 0 : index
      %124 = vector.load %arg20[%123, %c0_87] : memref<64x96xf32, #tpu.memory_space<vmem>>, vector<8x96xf32>
      %125 = arith.truncf %112 : vector<8x32xf32> to vector<8x32xbf16>
      %cst_88 = arith.constant dense<0.000000e+00> : vector<8x96xf32>
      %126 = tpu.matmul %125, %13, %cst_88 {dimension_numbers = #tpu.dot_dimension_numbers<[1], [0], [0], [1], [0, 0, 1, 1], [], []>} : vector<8x32xbf16>, vector<32x96xbf16>, vector<8x96xf32> -> vector<8x96xf32>
      %127 = arith.addf %126, %21 : vector<8x96xf32>
      %128 = vector.extract_strided_slice %124 {offsets = [0, 0], sizes = [8, 32], strides = [1, 1]} : vector<8x96xf32> to vector<8x32xf32>
      %129 = vector.extract_strided_slice %127 {offsets = [0, 0], sizes = [8, 32], strides = [1, 1]} : vector<8x96xf32> to vector<8x32xf32>
      %130 = arith.addf %128, %129 : vector<8x32xf32>
      %131 = arith.negf %130 : vector<8x32xf32>
      %132 = math.exp %131 : vector<8x32xf32>
      %cst_89 = arith.constant 1.000000e+00 : f32
      %133 = vector.broadcast %cst_89 : f32 to vector<8x32xf32>
      %134 = arith.addf %133, %132 : vector<8x32xf32>
      %135 = arith.divf %133, %134 : vector<8x32xf32>
      %136 = vector.extract_strided_slice %124 {offsets = [0, 32], sizes = [8, 32], strides = [1, 1]} : vector<8x96xf32> to vector<8x32xf32>
      %137 = vector.extract_strided_slice %127 {offsets = [0, 32], sizes = [8, 32], strides = [1, 1]} : vector<8x96xf32> to vector<8x32xf32>
      %138 = arith.addf %136, %137 : vector<8x32xf32>
      %139 = arith.negf %138 : vector<8x32xf32>
      %140 = math.exp %139 : vector<8x32xf32>
      %cst_90 = arith.constant 1.000000e+00 : f32
      %141 = vector.broadcast %cst_90 : f32 to vector<8x32xf32>
      %142 = arith.addf %141, %140 : vector<8x32xf32>
      %143 = arith.divf %141, %142 : vector<8x32xf32>
      %144 = vector.extract_strided_slice %124 {offsets = [0, 64], sizes = [8, 32], strides = [1, 1]} : vector<8x96xf32> to vector<8x32xf32>
      %145 = vector.extract_strided_slice %127 {offsets = [0, 64], sizes = [8, 32], strides = [1, 1]} : vector<8x96xf32> to vector<8x32xf32>
      %146 = arith.mulf %135, %145 : vector<8x32xf32>
      %147 = arith.addf %144, %146 : vector<8x32xf32>
      %148 = math.tanh %147 : vector<8x32xf32>
      %cst_91 = arith.constant 1.000000e+00 : f32
      %149 = vector.broadcast %cst_91 : f32 to vector<8x32xf32>
      %150 = arith.subf %149, %143 : vector<8x32xf32>
      %151 = arith.mulf %150, %148 : vector<8x32xf32>
      %152 = arith.mulf %143, %112 : vector<8x32xf32>
      %153 = arith.addf %151, %152 : vector<8x32xf32>
      %154 = arith.truncf %153 : vector<8x32xf32> to vector<8x32xbf16>
      %c0_92 = arith.constant 0 : index
      %155 = arith.index_cast %120 : i32 to index
      %c0_93 = arith.constant 0 : index
      %c0_94 = arith.constant 0 : index
      %156 = vector.load %arg11[%c0_92, %155, %c0_93, %c0_94] : memref<1x8x32x192xbf16, #tpu.memory_space<vmem>>, vector<1x1x32x192xbf16>
      %157 = vector.shape_cast %156 : vector<1x1x32x192xbf16> to vector<32x192xbf16>
      %cst_95 = arith.constant dense<0.000000e+00> : vector<8x192xf32>
      %158 = tpu.matmul %154, %157, %cst_95 {dimension_numbers = #tpu.dot_dimension_numbers<[1], [0], [0], [1], [0, 0, 1, 1], [], []>} : vector<8x32xbf16>, vector<32x192xbf16>, vector<8x192xf32> -> vector<8x192xf32>
      %159 = arith.addf %118, %158 : vector<8x192xf32>
      scf.yield %153, %159 : vector<8x32xf32>, vector<8x192xf32>
    }
    %c4_i32_45 = arith.constant 4 : i32
    %c0_46 = arith.constant 0 : index
    %c0_47 = arith.constant 0 : index
    %c0_48 = arith.constant 0 : index
    %41 = vector.load %arg12[%c0_46, %c0_47, %c0_48] : memref<1x1x192xf32, #tpu.memory_space<vmem>>, vector<1x1x192xf32>
    %42 = vector.shape_cast %41 : vector<1x1x192xf32> to vector<1x192xf32>
    %43 = vector.broadcast %42 : vector<1x192xf32> to vector<8x192xf32>
    %44 = arith.addf %40#1, %43 : vector<8x192xf32>
    %45 = arith.truncf %44 : vector<8x192xf32> to vector<8x192xbf16>
    %c0_49 = arith.constant 0 : index
    %c0_50 = arith.constant 0 : index
    %c0_51 = arith.constant 0 : index
    %46 = vector.load %arg13[%c0_49, %c0_50, %c0_51] : memref<1x192x128xbf16, #tpu.memory_space<vmem>>, vector<1x192x128xbf16>
    %47 = vector.shape_cast %46 : vector<1x192x128xbf16> to vector<192x128xbf16>
    %cst_52 = arith.constant dense<0.000000e+00> : vector<8x128xf32>
    %48 = tpu.matmul %45, %47, %cst_52 {dimension_numbers = #tpu.dot_dimension_numbers<[1], [0], [0], [1], [0, 0, 1, 1], [], []>} : vector<8x192xbf16>, vector<192x128xbf16>, vector<8x128xf32> -> vector<8x128xf32>
    %49 = arith.truncf %40#0 : vector<8x32xf32> to vector<8x32xbf16>
    %c0_53 = arith.constant 0 : index
    %c0_54 = arith.constant 0 : index
    %c0_55 = arith.constant 0 : index
    %50 = vector.load %arg14[%c0_53, %c0_54, %c0_55] : memref<1x32x128xbf16, #tpu.memory_space<vmem>>, vector<1x32x128xbf16>
    %51 = vector.shape_cast %50 : vector<1x32x128xbf16> to vector<32x128xbf16>
    %cst_56 = arith.constant dense<0.000000e+00> : vector<8x128xf32>
    %52 = tpu.matmul %49, %51, %cst_56 {dimension_numbers = #tpu.dot_dimension_numbers<[1], [0], [0], [1], [0, 0, 1, 1], [], []>} : vector<8x32xbf16>, vector<32x128xbf16>, vector<8x128xf32> -> vector<8x128xf32>
    %53 = arith.addf %48, %52 : vector<8x128xf32>
    %54 = arith.truncf %25 : vector<8x32xf32> to vector<8x32xbf16>
    %c0_57 = arith.constant 0 : index
    %c0_58 = arith.constant 0 : index
    %c0_59 = arith.constant 0 : index
    %55 = vector.load %arg15[%c0_57, %c0_58, %c0_59] : memref<1x32x128xbf16, #tpu.memory_space<vmem>>, vector<1x32x128xbf16>
    %56 = vector.shape_cast %55 : vector<1x32x128xbf16> to vector<32x128xbf16>
    %cst_60 = arith.constant dense<0.000000e+00> : vector<8x128xf32>
    %57 = tpu.matmul %54, %56, %cst_60 {dimension_numbers = #tpu.dot_dimension_numbers<[1], [0], [0], [1], [0, 0, 1, 1], [], []>} : vector<8x32xbf16>, vector<32x128xbf16>, vector<8x128xf32> -> vector<8x128xf32>
    %58 = arith.addf %53, %57 : vector<8x128xf32>
    %c0_61 = arith.constant 0 : index
    %c0_62 = arith.constant 0 : index
    %c0_63 = arith.constant 0 : index
    %59 = vector.load %arg16[%c0_61, %c0_62, %c0_63] : memref<1x1x128xf32, #tpu.memory_space<vmem>>, vector<1x1x128xf32>
    %60 = vector.shape_cast %59 : vector<1x1x128xf32> to vector<1x128xf32>
    %61 = vector.broadcast %60 : vector<1x128xf32> to vector<8x128xf32>
    %62 = arith.addf %58, %61 : vector<8x128xf32>
    %63 = arith.negf %62 : vector<8x128xf32>
    %64 = math.exp %63 : vector<8x128xf32>
    %cst_64 = arith.constant 1.000000e+00 : f32
    %65 = vector.broadcast %cst_64 : f32 to vector<8x128xf32>
    %66 = arith.addf %65, %64 : vector<8x128xf32>
    %67 = arith.divf %65, %66 : vector<8x128xf32>
    %68 = arith.truncf %67 : vector<8x128xf32> to vector<8x128xbf16>
    %c0_65 = arith.constant 0 : index
    %c0_66 = arith.constant 0 : index
    %c0_67 = arith.constant 0 : index
    %69 = vector.load %arg17[%c0_65, %c0_66, %c0_67] : memref<1x128x32xbf16, #tpu.memory_space<vmem>>, vector<1x128x32xbf16>
    %70 = vector.shape_cast %69 : vector<1x128x32xbf16> to vector<128x32xbf16>
    %cst_68 = arith.constant dense<0.000000e+00> : vector<8x32xf32>
    %71 = tpu.matmul %68, %70, %cst_68 {dimension_numbers = #tpu.dot_dimension_numbers<[1], [0], [0], [1], [0, 0, 1, 1], [], []>} : vector<8x128xbf16>, vector<128x32xbf16>, vector<8x32xf32> -> vector<8x32xf32>
    %c0_69 = arith.constant 0 : index
    %c0_70 = arith.constant 0 : index
    %c0_71 = arith.constant 0 : index
    %72 = vector.load %arg18[%c0_69, %c0_70, %c0_71] : memref<1x1x32xf32, #tpu.memory_space<vmem>>, vector<1x1x32xf32>
    %73 = vector.shape_cast %72 : vector<1x1x32xf32> to vector<1x32xf32>
    %74 = vector.broadcast %73 : vector<1x32xf32> to vector<8x32xf32>
    %75 = arith.addf %71, %74 : vector<8x32xf32>
    %c0_72 = arith.constant 0 : index
    %c0_73 = arith.constant 0 : index
    %c0_74 = arith.constant 0 : index
    %76 = vector.load %arg19[%c0_72, %c0_73, %c0_74] : memref<1x8x32xf32, #tpu.memory_space<vmem>>, vector<1x8x32xf32>
    %77 = vector.shape_cast %76 : vector<1x8x32xf32> to vector<8x32xf32>
    %78 = vector.shape_cast %75 : vector<8x32xf32> to vector<1x8x32xf32>
    tpu.vector_store %arg19[%c0_72, %c0_73, %c0_74], %78 {strides = array<i32>} : memref<1x8x32xf32, #tpu.memory_space<vmem>>, vector<1x8x32xf32>,
    return
  }
  func.func @transform_0(%arg0: i32) -> (i32, i32, i32) {
    %c0_i32 = arith.constant 0 : i32
    %c0_i32_0 = arith.constant 0 : i32
    %c0_i32_1 = arith.constant 0 : i32
    return %arg0, %c0_i32, %c0_i32_0 : i32, i32, i32
  }
  func.func @transform_1(%arg0: i32) -> (i32, i32, i32, i32) {
    %c0_i32 = arith.constant 0 : i32
    %c0_i32_0 = arith.constant 0 : i32
    %c0_i32_1 = arith.constant 0 : i32
    %c0_i32_2 = arith.constant 0 : i32
    return %arg0, %c0_i32, %c0_i32_0, %c0_i32_1 : i32, i32, i32, i32
  }
  func.func @transform_2(%arg0: i32) -> (i32, i32, i32) {
    %c0_i32 = arith.constant 0 : i32
    %c0_i32_0 = arith.constant 0 : i32
    %c0_i32_1 = arith.constant 0 : i32
    return %arg0, %c0_i32, %c0_i32_0 : i32, i32, i32
  }
  func.func @transform_3(%arg0: i32) -> (i32, i32, i32) {
    %c0_i32 = arith.constant 0 : i32
    %c0_i32_0 = arith.constant 0 : i32
    %c0_i32_1 = arith.constant 0 : i32
    return %arg0, %c0_i32, %c0_i32_0 : i32, i32, i32
  }
  func.func @transform_4(%arg0: i32) -> (i32, i32, i32) {
    %c0_i32 = arith.constant 0 : i32
    %c0_i32_0 = arith.constant 0 : i32
    %c0_i32_1 = arith.constant 0 : i32
    return %arg0, %c0_i32, %c0_i32_0 : i32, i32, i32
  }
  func.func @transform_5(%arg0: i32) -> (i32, i32, i32) {
    %c0_i32 = arith.constant 0 : i32
    %c0_i32_0 = arith.constant 0 : i32
    %c0_i32_1 = arith.constant 0 : i32
    return %arg0, %c0_i32, %c0_i32_0 : i32, i32, i32
  }
  func.func @transform_6(%arg0: i32) -> (i32, i32, i32) {
    %c0_i32 = arith.constant 0 : i32
    %c0_i32_0 = arith.constant 0 : i32
    %c0_i32_1 = arith.constant 0 : i32
    return %arg0, %c0_i32, %c0_i32_0 : i32, i32, i32
  }
  func.func @transform_7(%arg0: i32) -> (i32, i32, i32) {
    %c0_i32 = arith.constant 0 : i32
    %c0_i32_0 = arith.constant 0 : i32
    %c0_i32_1 = arith.constant 0 : i32
    return %arg0, %c0_i32, %c0_i32_0 : i32, i32, i32
  }
  func.func @transform_8(%arg0: i32) -> (i32, i32, i32) {
    %c0_i32 = arith.constant 0 : i32
    %c0_i32_0 = arith.constant 0 : i32
    %c0_i32_1 = arith.constant 0 : i32
    return %arg0, %c0_i32, %c0_i32_0 : i32, i32, i32
  }
  func.func @transform_9(%arg0: i32) -> (i32, i32, i32) {
    %c0_i32 = arith.constant 0 : i32
    %c0_i32_0 = arith.constant 0 : i32
    %c0_i32_1 = arith.constant 0 : i32
    return %arg0, %c0_i32, %c0_i32_0 : i32, i32, i32
  }
  func.func @transform_10(%arg0: i32) -> (i32, i32, i32, i32) {
    %c0_i32 = arith.constant 0 : i32
    %c0_i32_0 = arith.constant 0 : i32
    %c0_i32_1 = arith.constant 0 : i32
    %c0_i32_2 = arith.constant 0 : i32
    return %arg0, %c0_i32, %c0_i32_0, %c0_i32_1 : i32, i32, i32, i32
  }
  func.func @transform_11(%arg0: i32) -> (i32, i32, i32) {
    %c0_i32 = arith.constant 0 : i32
    %c0_i32_0 = arith.constant 0 : i32
    %c0_i32_1 = arith.constant 0 : i32
    return %arg0, %c0_i32, %c0_i32_0 : i32, i32, i32
  }
  func.func @transform_12(%arg0: i32) -> (i32, i32, i32) {
    %c0_i32 = arith.constant 0 : i32
    %c0_i32_0 = arith.constant 0 : i32
    %c0_i32_1 = arith.constant 0 : i32
    return %arg0, %c0_i32, %c0_i32_0 : i32, i32, i32
  }
  func.func @transform_13(%arg0: i32) -> (i32, i32, i32) {
    %c0_i32 = arith.constant 0 : i32
    %c0_i32_0 = arith.constant 0 : i32
    %c0_i32_1 = arith.constant 0 : i32
    return %arg0, %c0_i32, %c0_i32_0 : i32, i32, i32
  }
  func.func @transform_14(%arg0: i32) -> (i32, i32, i32) {
    %c0_i32 = arith.constant 0 : i32
    %c0_i32_0 = arith.constant 0 : i32
    %c0_i32_1 = arith.constant 0 : i32
    return %arg0, %c0_i32, %c0_i32_0 : i32, i32, i32
  }
  func.func @transform_15(%arg0: i32) -> (i32, i32, i32) {
    %c0_i32 = arith.constant 0 : i32
    %c0_i32_0 = arith.constant 0 : i32
    %c0_i32_1 = arith.constant 0 : i32
    return %arg0, %c0_i32, %c0_i32_0 : i32, i32, i32
  }
  func.func @transform_16(%arg0: i32) -> (i32, i32, i32) {
    %c0_i32 = arith.constant 0 : i32
    %c0_i32_0 = arith.constant 0 : i32
    %c0_i32_1 = arith.constant 0 : i32
    return %arg0, %c0_i32, %c0_i32_0 : i32, i32, i32
  }
  func.func @transform_17(%arg0: i32) -> (i32, i32, i32) {
    %c0_i32 = arith.constant 0 : i32
    %c0_i32_0 = arith.constant 0 : i32
    %c0_i32_1 = arith.constant 0 : i32
    return %arg0, %c0_i32, %c0_i32_0 : i32, i32, i32
  }
  func.func @transform_18(%arg0: i32) -> (i32, i32, i32) {
    %c0_i32 = arith.constant 0 : i32
    %c0_i32_0 = arith.constant 0 : i32
    %c0_i32_1 = arith.constant 0 : i32
    return %arg0, %c0_i32, %c0_i32_0 : i32, i32, i32
  }
}

</mosaic_0001>

<llo_original>
// kernel: tpu_custom_call.1
$region0: #{tpu_custom_call.1}
  #allocation0 [shape = 'u32[]', space=smem, size = 0x4, offset = 0x4, fixed_abs, tag = 'smem constant byte address 0x4 - core index']
  #allocation1 [shape = 'u32[144,128]{1,0:T(1,128)}', space=vmem, size = 0x12000, scoped, tag = 'internal scratch']
  #allocation2 [shape = 'f32[64,96]{1,0:T(8,128)}', space=vmem, size = 0x8000, scoped, tag = 'scratch operand']
  #allocation3 [shape = 'f32[64,32]{1,0:T(8,128)}', space=vmem, size = 0x8000, scoped, tag = 'scratch operand']
  %s0 = inlined_call_operand.vmem [shape: bf16[2,64,64], index: 0, kind: input, shape index: {}]
  %s1 = inlined_call_operand.vmem [shape: f32[2,2,8,32], index: 1, kind: input, shape index: {}]
  %s2 = inlined_call_operand.vmem [shape: bf16[2,64,96], index: 2, kind: input, shape index: {}]
  %s3 = inlined_call_operand.hbm [shape: bf16[2,32,96], index: 3, kind: input, shape index: {}]
  %s4 = inlined_call_operand.vmem [shape: f32[2,1,96], index: 4, kind: input, shape index: {}]
  %s5 = inlined_call_operand.vmem [shape: f32[2,1,96], index: 5, kind: input, shape index: {}]
  %s6 = inlined_call_operand.hbm [shape: bf16[2,32,96], index: 6, kind: input, shape index: {}]
  %s7 = inlined_call_operand.hbm [shape: bf16[2,32,96], index: 7, kind: input, shape index: {}]
  %s8 = inlined_call_operand.vmem [shape: f32[2,1,96], index: 8, kind: input, shape index: {}]
  %s9 = inlined_call_operand.vmem [shape: f32[2,1,96], index: 9, kind: input, shape index: {}]
  %s10 = inlined_call_operand.hbm [shape: bf16[2,8,32,192], index: 10, kind: input, shape index: {}]
  %s11 = inlined_call_operand.vmem [shape: f32[2,1,192], index: 11, kind: input, shape index: {}]
  %s12 = inlined_call_operand.hbm [shape: bf16[2,192,128], index: 12, kind: input, shape index: {}]
  %s13 = inlined_call_operand.hbm [shape: bf16[2,32,128], index: 13, kind: input, shape index: {}]
  %s14 = inlined_call_operand.hbm [shape: bf16[2,32,128], index: 14, kind: input, shape index: {}]
  %s15 = inlined_call_operand.vmem [shape: f32[2,1,128], index: 15, kind: input, shape index: {}]
  %s16 = inlined_call_operand.vmem [shape: bf16[2,128,32], index: 16, kind: input, shape index: {}]
  %s17 = inlined_call_operand.vmem [shape: f32[2,1,32], index: 17, kind: input, shape index: {}]
  %s18 = inlined_call_operand.hbm [shape: f32[2,8,32], index: 18, kind: output, shape index: {}]
  %s19 = sld [smem:[#allocation0]]
  $region147: #{tpu_custom_call.1} parent=0
    _
  %s21 = ssub.s32 1, %s19
  %s22 = scalar_select 0, %s21, %s19
  $region1: #{tpu_custom_call.1} parent=0
    #allocation4 [shape = 'u8[16384]{0}', space=vmem, size = 0x4000, scoped, tag = 'input window, operand 3']
    #allocation5 [shape = 's32[2]{0}', space=sflag, size = 0x8, scoped, tag = 'scoped memory for tpu_custom_call.1']
    #allocation6 [shape = 's32[2]{0}', space=sflag, size = 0x8, scoped, tag = 'scoped memory for tpu_custom_call.1']
    #allocation7 [shape = 'u8[16384]{0}', space=vmem, size = 0x4000, scoped, tag = 'input window, operand 6']
    #allocation8 [shape = 's32[2]{0}', space=sflag, size = 0x8, scoped, tag = 'scoped memory for tpu_custom_call.1']
    #allocation9 [shape = 'u8[16384]{0}', space=vmem, size = 0x4000, scoped, tag = 'input window, operand 7']
    #allocation10 [shape = 'u8[262144]{0}', space=vmem, size = 0x40000, scoped, tag = 'input window, operand 10']
    #allocation11 [shape = 's32[2]{0}', space=sflag, size = 0x8, scoped, tag = 'scoped memory for tpu_custom_call.1']
    #allocation12 [shape = 'u8[98304]{0}', space=vmem, size = 0x18000, scoped, tag = 'input window, operand 12']
    #allocation13 [shape = 'u8[16384]{0}', space=vmem, size = 0x4000, scoped, tag = 'input window, operand 13']
    #allocation14 [shape = 's32[2]{0}', space=sflag, size = 0x8, scoped, tag = 'scoped memory for tpu_custom_call.1']
    #allocation15 [shape = 'u8[16384]{0}', space=vmem, size = 0x4000, scoped, tag = 'input window, operand 14']
    #allocation16 [shape = 'u8[8192]{0}', space=vmem, size = 0x2000, scoped, tag = 'output window, operand 0']
    %23 = vsyncpa [#allocation5], 0
    %s24 = scalar_lea.sflag [#allocation5], 1
    %25 = vsyncpa %s24, 0
    %26 = vsyncpa [#allocation8], 0
    %s27 = scalar_lea.sflag [#allocation8], 1
    %28 = vsyncpa %s27, 0
    %29 = vsyncpa [#allocation11], 0
    %s30 = scalar_lea.sflag [#allocation11], 1
    %31 = vsyncpa %s30, 0
    %32 = vsyncpa [#allocation14], 0
    %s33 = scalar_lea.sflag [#allocation14], 1
    %34 = vsyncpa %s33, 0
    %35 = vsyncpa [#allocation6], 0
    %s36 = scalar_lea.sflag [#allocation6], 1
    %37 = vsyncpa %s36, 0
    loop: start=0, step=1, limit=4
    $region2: #{tpu_custom_call.1} parent=1 // loop_pre_header
      _
    $region3: #{tpu_custom_call.1} parent=1 // loop_header
      %s39 = sphi 0, %s43
      %p40 = scmp.ge.s32.totalorder %s39, 4
      %s49 = sphi 0, %s51
      %s52 = sphi 0, %s49
      %s53 = sphi 0, %s52
      %s69 = sphi 0, %s53
      %s75 = sphi 0, %s77
      %s78 = sphi 0, %s75
      %s79 = sphi 0, %s78
      %s95 = sphi 0, %s79
      %s101 = sphi 0, %s103
      %s104 = sphi 0, %s101
      %s105 = sphi 0, %s104
      %s121 = sphi 0, %s105
      %s127 = sphi 0, %s129
      %s130 = sphi 0, %s127
      %s131 = sphi 0, %s130
      %s147 = sphi 0, %s131
      %s153 = sphi 0, %s155
      %s156 = sphi 0, %s153
      %s157 = sphi 0, %s156
      %s173 = sphi 0, %s157
      %s179 = sphi 0, %s181
      %s182 = sphi 0, %s179
      %s183 = sphi 0, %s182
      %s199 = sphi 0, %s183
      %s205 = sphi 0, %s207
      %s208 = sphi 0, %s205
      %s209 = sphi 0, %s208
      %s225 = sphi 0, %s209
      %s231 = sphi 0, %s233
      %s234 = sphi 0, %s231
      %s235 = sphi 0, %s234
      %s251 = sphi 0, %s235
      %s257 = sphi 0, %s259
      %s260 = sphi 0, %s257
      %s261 = sphi 0, %s260
      %s277 = sphi 0, %s261
      %s283 = sphi 0, %s285
      %s286 = sphi 0, %s283
      %s287 = sphi 0, %s286
      %s303 = sphi 0, %s287
      %s309 = sphi 0, %s311
      %s312 = sphi 0, %s309
      %s313 = sphi 0, %s312
      %s329 = sphi 0, %s313
      %s335 = sphi 0, %s337
      %s338 = sphi 0, %s335
      %s339 = sphi 0, %s338
      %s355 = sphi 0, %s339
      %s361 = sphi 0, %s363
      %s364 = sphi 0, %s361
      %s365 = sphi 0, %s364
      %s381 = sphi 0, %s365
      %s387 = sphi 0, %s389
      %s390 = sphi 0, %s387
      %s391 = sphi 0, %s390
      %s407 = sphi 0, %s391
      %s413 = sphi 0, %s415
      %s416 = sphi 0, %s413
      %s417 = sphi 0, %s416
      %s433 = sphi 0, %s417
      %s439 = sphi 0, %s441
      %s442 = sphi 0, %s439
      %s443 = sphi 0, %s442
      %s459 = sphi 0, %s443
      %s465 = sphi 0, %s467
      %s468 = sphi 0, %s465
      %s469 = sphi 0, %s468
      %s485 = sphi 0, %s469
      %s491 = sphi 0, %s493
      %s494 = sphi 0, %s491
      %s495 = sphi 0, %s494
      %s511 = sphi 0, %s495
      %s517 = sphi 0, %s519
      %s520 = sphi 0, %s517
      %s521 = sphi 0, %s520
      %s537 = sphi 0, %s521
    $region4: #{tpu_custom_call.1} parent=1 // loop_header_branch
      %42 = sbr.rel (%p40) target = $region8
    $region5: #{tpu_custom_call.1} parent=1 // loop_body
      %s44 = ssub.s32 %s39, 1
      %s45 = ssub.s32 %s39, 2
      %s46 = sadd.s32 %s39, 1
      %s47 = ssub.s32 %s39, %s46
      %p48 = scmp.eq.s32.totalorder %s47, 0
      %s50 = sadd.s32 %s49, 1
      %s51 = scalar_select %p48, %s49, %s50
      %p54 = pneg %p48
      %p55 = scmp.eq.s32.totalorder %s39, 1
      %p56 = por %p54, %p55
      %p57 = scmp.ne.s32.totalorder %s49, %s52
      %p58 = scmp.eq.s32.totalorder %s39, 0
      %p59 = por %p57, %p58
      %p60 = scmp.ne.s32.totalorder %s49, %s52
      %p61 = scmp.eq.s32.totalorder %s44, 1
      %p62 = por %p60, %p61
      %p63 = scmp.ne.s32.totalorder %s52, %s53
      %p64 = scmp.eq.s32.totalorder %s44, 0
      %p65 = por %p63, %p64
      %p66 = scmp.ne.s32.totalorder %s52, %s53
      %p67 = scmp.eq.s32.totalorder %s45, 1
      %p68 = por %p66, %p67
      %p70 = scmp.ne.s32.totalorder %s53, %s69
      %p71 = scmp.eq.s32.totalorder %s45, 0
      %p72 = por %p70, %p71
      %s73 = ssub.s32 %s39, %s46
      %p74 = scmp.eq.s32.totalorder %s73, 0
      %s76 = sadd.s32 %s75, 1
      %s77 = scalar_select %p74, %s75, %s76
      %p80 = pneg %p74
      %p81 = scmp.eq.s32.totalorder %s39, 1
      %p82 = por %p80, %p81
      %p83 = scmp.ne.s32.totalorder %s75, %s78
      %p84 = scmp.eq.s32.totalorder %s39, 0
      %p85 = por %p83, %p84
      %p86 = scmp.ne.s32.totalorder %s75, %s78
      %p87 = scmp.eq.s32.totalorder %s44, 1
      %p88 = por %p86, %p87
      %p89 = scmp.ne.s32.totalorder %s78, %s79
      %p90 = scmp.eq.s32.totalorder %s44, 0
      %p91 = por %p89, %p90
      %p92 = scmp.ne.s32.totalorder %s78, %s79
      %p93 = scmp.eq.s32.totalorder %s45, 1
      %p94 = por %p92, %p93
      %p96 = scmp.ne.s32.totalorder %s79, %s95
      %p97 = scmp.eq.s32.totalorder %s45, 0
      %p98 = por %p96, %p97
      %s99 = ssub.s32 %s39, %s46
      %p100 = scmp.eq.s32.totalorder %s99, 0
      %s102 = sadd.s32 %s101, 1
      %s103 = scalar_select %p100, %s101, %s102
      %p106 = pneg %p100
      %p107 = scmp.eq.s32.totalorder %s39, 1
      %p108 = por %p106, %p107
      %p109 = scmp.ne.s32.totalorder %s101, %s104
      %p110 = scmp.eq.s32.totalorder %s39, 0
      %p111 = por %p109, %p110
      %p112 = scmp.ne.s32.totalorder %s101, %s104
      %p113 = scmp.eq.s32.totalorder %s44, 1
      %p114 = por %p112, %p113
      %p115 = scmp.ne.s32.totalorder %s104, %s105
      %p116 = scmp.eq.s32.totalorder %s44, 0
      %p117 = por %p115, %p116
      %p118 = scmp.ne.s32.totalorder %s104, %s105
      %p119 = scmp.eq.s32.totalorder %s45, 1
      %p120 = por %p118, %p119
      %p122 = scmp.ne.s32.totalorder %s105, %s121
      %p123 = scmp.eq.s32.totalorder %s45, 0
      %p124 = por %p122, %p123
      %s125 = ssub.s32 %s39, %s46
      %p126 = scmp.eq.s32.totalorder %s125, 0
      %s128 = sadd.s32 %s127, 1
      %s129 = scalar_select %p126, %s127, %s128
      %p132 = pneg %p126
      %p133 = scmp.eq.s32.totalorder %s39, 1
      %p134 = por %p132, %p133
      %p135 = scmp.ne.s32.totalorder %s127, %s130
      %p136 = scmp.eq.s32.totalorder %s39, 0
      %p137 = por %p135, %p136
      %p138 = scmp.ne.s32.totalorder %s127, %s130
      %p139 = scmp.eq.s32.totalorder %s44, 1
      %p140 = por %p138, %p139
      %p141 = scmp.ne.s32.totalorder %s130, %s131
      %p142 = scmp.eq.s32.totalorder %s44, 0
      %p143 = por %p141, %p142
      %p144 = scmp.ne.s32.totalorder %s130, %s131
      %p145 = scmp.eq.s32.totalorder %s45, 1
      %p146 = por %p144, %p145
      %p148 = scmp.ne.s32.totalorder %s131, %s147
      %p149 = scmp.eq.s32.totalorder %s45, 0
      %p150 = por %p148, %p149
      %s151 = ssub.s32 %s39, %s46
      %p152 = scmp.eq.s32.totalorder %s151, 0
      %s154 = sadd.s32 %s153, 1
      %s155 = scalar_select %p152, %s153, %s154
      %p158 = pneg %p152
      %p159 = scmp.eq.s32.totalorder %s39, 1
      %p160 = por %p158, %p159
      %p161 = scmp.ne.s32.totalorder %s153, %s156
      %p162 = scmp.eq.s32.totalorder %s39, 0
      %p163 = por %p161, %p162
      %p164 = scmp.ne.s32.totalorder %s153, %s156
      %p165 = scmp.eq.s32.totalorder %s44, 1
      %p166 = por %p164, %p165
      %p167 = scmp.ne.s32.totalorder %s156, %s157
      %p168 = scmp.eq.s32.totalorder %s44, 0
      %p169 = por %p167, %p168
      %p170 = scmp.ne.s32.totalorder %s156, %s157
      %p171 = scmp.eq.s32.totalorder %s45, 1
      %p172 = por %p170, %p171
      %p174 = scmp.ne.s32.totalorder %s157, %s173
      %p175 = scmp.eq.s32.totalorder %s45, 0
      %p176 = por %p174, %p175
      %s177 = ssub.s32 %s39, %s46
      %p178 = scmp.eq.s32.totalorder %s177, 0
      %s180 = sadd.s32 %s179, 1
      %s181 = scalar_select %p178, %s179, %s180
      %p184 = pneg %p178
      %p185 = scmp.eq.s32.totalorder %s39, 1
      %p186 = por %p184, %p185
      %p187 = scmp.ne.s32.totalorder %s179, %s182
      %p188 = scmp.eq.s32.totalorder %s39, 0
      %p189 = por %p187, %p188
      %p190 = scmp.ne.s32.totalorder %s179, %s182
      %p191 = scmp.eq.s32.totalorder %s44, 1
      %p192 = por %p190, %p191
      %p193 = scmp.ne.s32.totalorder %s182, %s183
      %p194 = scmp.eq.s32.totalorder %s44, 0
      %p195 = por %p193, %p194
      %p196 = scmp.ne.s32.totalorder %s182, %s183
      %p197 = scmp.eq.s32.totalorder %s45, 1
      %p198 = por %p196, %p197
      %p200 = scmp.ne.s32.totalorder %s183, %s199
      %p201 = scmp.eq.s32.totalorder %s45, 0
      %p202 = por %p200, %p201
      %s203 = ssub.s32 %s39, %s46
      %p204 = scmp.eq.s32.totalorder %s203, 0
      %s206 = sadd.s32 %s205, 1
      %s207 = scalar_select %p204, %s205, %s206
      %p210 = pneg %p204
      %p211 = scmp.eq.s32.totalorder %s39, 1
      %p212 = por %p210, %p211
      %p213 = scmp.ne.s32.totalorder %s205, %s208
      %p214 = scmp.eq.s32.totalorder %s39, 0
      %p215 = por %p213, %p214
      %p216 = scmp.ne.s32.totalorder %s205, %s208
      %p217 = scmp.eq.s32.totalorder %s44, 1
      %p218 = por %p216, %p217
      %p219 = scmp.ne.s32.totalorder %s208, %s209
      %p220 = scmp.eq.s32.totalorder %s44, 0
      %p221 = por %p219, %p220
      %p222 = scmp.ne.s32.totalorder %s208, %s209
      %p223 = scmp.eq.s32.totalorder %s45, 1
      %p224 = por %p222, %p223
      %p226 = scmp.ne.s32.totalorder %s209, %s225
      %p227 = scmp.eq.s32.totalorder %s45, 0
      %p228 = por %p226, %p227
      %s229 = ssub.s32 %s39, %s46
      %p230 = scmp.eq.s32.totalorder %s229, 0
      %s232 = sadd.s32 %s231, 1
      %s233 = scalar_select %p230, %s231, %s232
      %p236 = pneg %p230
      %p237 = scmp.eq.s32.totalorder %s39, 1
      %p238 = por %p236, %p237
      %p239 = scmp.ne.s32.totalorder %s231, %s234
      %p240 = scmp.eq.s32.totalorder %s39, 0
      %p241 = por %p239, %p240
      %p242 = scmp.ne.s32.totalorder %s231, %s234
      %p243 = scmp.eq.s32.totalorder %s44, 1
      %p244 = por %p242, %p243
      %p245 = scmp.ne.s32.totalorder %s234, %s235
      %p246 = scmp.eq.s32.totalorder %s44, 0
      %p247 = por %p245, %p246
      %p248 = scmp.ne.s32.totalorder %s234, %s235
      %p249 = scmp.eq.s32.totalorder %s45, 1
      %p250 = por %p248, %p249
      %p252 = scmp.ne.s32.totalorder %s235, %s251
      %p253 = scmp.eq.s32.totalorder %s45, 0
      %p254 = por %p252, %p253
      %s255 = ssub.s32 %s39, %s46
      %p256 = scmp.eq.s32.totalorder %s255, 0
      %s258 = sadd.s32 %s257, 1
      %s259 = scalar_select %p256, %s257, %s258
      %p262 = pneg %p256
      %p263 = scmp.eq.s32.totalorder %s39, 1
      %p264 = por %p262, %p263
      %p265 = scmp.ne.s32.totalorder %s257, %s260
      %p266 = scmp.eq.s32.totalorder %s39, 0
      %p267 = por %p265, %p266
      %p268 = scmp.ne.s32.totalorder %s257, %s260
      %p269 = scmp.eq.s32.totalorder %s44, 1
      %p270 = por %p268, %p269
      %p271 = scmp.ne.s32.totalorder %s260, %s261
      %p272 = scmp.eq.s32.totalorder %s44, 0
      %p273 = por %p271, %p272
      %p274 = scmp.ne.s32.totalorder %s260, %s261
      %p275 = scmp.eq.s32.totalorder %s45, 1
      %p276 = por %p274, %p275
      %p278 = scmp.ne.s32.totalorder %s261, %s277
      %p279 = scmp.eq.s32.totalorder %s45, 0
      %p280 = por %p278, %p279
      %s281 = ssub.s32 %s39, %s46
      %p282 = scmp.eq.s32.totalorder %s281, 0
      %s284 = sadd.s32 %s283, 1
      %s285 = scalar_select %p282, %s283, %s284
      %p288 = pneg %p282
      %p289 = scmp.eq.s32.totalorder %s39, 1
      %p290 = por %p288, %p289
      %p291 = scmp.ne.s32.totalorder %s283, %s286
      %p292 = scmp.eq.s32.totalorder %s39, 0
      %p293 = por %p291, %p292
      %p294 = scmp.ne.s32.totalorder %s283, %s286
      %p295 = scmp.eq.s32.totalorder %s44, 1
      %p296 = por %p294, %p295
      %p297 = scmp.ne.s32.totalorder %s286, %s287
      %p298 = scmp.eq.s32.totalorder %s44, 0
      %p299 = por %p297, %p298
      %p300 = scmp.ne.s32.totalorder %s286, %s287
      %p301 = scmp.eq.s32.totalorder %s45, 1
      %p302 = por %p300, %p301
      %p304 = scmp.ne.s32.totalorder %s287, %s303
      %p305 = scmp.eq.s32.totalorder %s45, 0
      %p306 = por %p304, %p305
      %s307 = ssub.s32 %s39, %s46
      %p308 = scmp.eq.s32.totalorder %s307, 0
      %s310 = sadd.s32 %s309, 1
      %s311 = scalar_select %p308, %s309, %s310
      %p314 = pneg %p308
      %p315 = scmp.eq.s32.totalorder %s39, 1
      %p316 = por %p314, %p315
      %p317 = scmp.ne.s32.totalorder %s309, %s312
      %p318 = scmp.eq.s32.totalorder %s39, 0
      %p319 = por %p317, %p318
      %p320 = scmp.ne.s32.totalorder %s309, %s312
      %p321 = scmp.eq.s32.totalorder %s44, 1
      %p322 = por %p320, %p321
      %p323 = scmp.ne.s32.totalorder %s312, %s313
      %p324 = scmp.eq.s32.totalorder %s44, 0
      %p325 = por %p323, %p324
      %p326 = scmp.ne.s32.totalorder %s312, %s313
      %p327 = scmp.eq.s32.totalorder %s45, 1
      %p328 = por %p326, %p327
      %p330 = scmp.ne.s32.totalorder %s313, %s329
      %p331 = scmp.eq.s32.totalorder %s45, 0
      %p332 = por %p330, %p331
      %s333 = ssub.s32 %s39, %s46
      %p334 = scmp.eq.s32.totalorder %s333, 0
      %s336 = sadd.s32 %s335, 1
      %s337 = scalar_select %p334, %s335, %s336
      %p340 = pneg %p334
      %p341 = scmp.eq.s32.totalorder %s39, 1
      %p342 = por %p340, %p341
      %p343 = scmp.ne.s32.totalorder %s335, %s338
      %p344 = scmp.eq.s32.totalorder %s39, 0
      %p345 = por %p343, %p344
      %p346 = scmp.ne.s32.totalorder %s335, %s338
      %p347 = scmp.eq.s32.totalorder %s44, 1
      %p348 = por %p346, %p347
      %p349 = scmp.ne.s32.totalorder %s338, %s339
      %p350 = scmp.eq.s32.totalorder %s44, 0
      %p351 = por %p349, %p350
      %p352 = scmp.ne.s32.totalorder %s338, %s339
      %p353 = scmp.eq.s32.totalorder %s45, 1
      %p354 = por %p352, %p353
      %p356 = scmp.ne.s32.totalorder %s339, %s355
      %p357 = scmp.eq.s32.totalorder %s45, 0
      %p358 = por %p356, %p357
      %s359 = ssub.s32 %s39, %s46
      %p360 = scmp.eq.s32.totalorder %s359, 0
      %s362 = sadd.s32 %s361, 1
      %s363 = scalar_select %p360, %s361, %s362
      %p366 = pneg %p360
      %p367 = scmp.eq.s32.totalorder %s39, 1
      %p368 = por %p366, %p367
      %p369 = scmp.ne.s32.totalorder %s361, %s364
      %p370 = scmp.eq.s32.totalorder %s39, 0
      %p371 = por %p369, %p370
      %p372 = scmp.ne.s32.totalorder %s361, %s364
      %p373 = scmp.eq.s32.totalorder %s44, 1
      %p374 = por %p372, %p373
      %p375 = scmp.ne.s32.totalorder %s364, %s365
      %p376 = scmp.eq.s32.totalorder %s44, 0
      %p377 = por %p375, %p376
      %p378 = scmp.ne.s32.totalorder %s364, %s365
      %p379 = scmp.eq.s32.totalorder %s45, 1
      %p380 = por %p378, %p379
      %p382 = scmp.ne.s32.totalorder %s365, %s381
      %p383 = scmp.eq.s32.totalorder %s45, 0
      %p384 = por %p382, %p383
      %s385 = ssub.s32 %s39, %s46
      %p386 = scmp.eq.s32.totalorder %s385, 0
      %s388 = sadd.s32 %s387, 1
      %s389 = scalar_select %p386, %s387, %s388
      %p392 = pneg %p386
      %p393 = scmp.eq.s32.totalorder %s39, 1
      %p394 = por %p392, %p393
      %p395 = scmp.ne.s32.totalorder %s387, %s390
      %p396 = scmp.eq.s32.totalorder %s39, 0
      %p397 = por %p395, %p396
      %p398 = scmp.ne.s32.totalorder %s387, %s390
      %p399 = scmp.eq.s32.totalorder %s44, 1
      %p400 = por %p398, %p399
      %p401 = scmp.ne.s32.totalorder %s390, %s391
      %p402 = scmp.eq.s32.totalorder %s44, 0
      %p403 = por %p401, %p402
      %p404 = scmp.ne.s32.totalorder %s390, %s391
      %p405 = scmp.eq.s32.totalorder %s45, 1
      %p406 = por %p404, %p405
      %p408 = scmp.ne.s32.totalorder %s391, %s407
      %p409 = scmp.eq.s32.totalorder %s45, 0
      %p410 = por %p408, %p409
      %s411 = ssub.s32 %s39, %s46
      %p412 = scmp.eq.s32.totalorder %s411, 0
      %s414 = sadd.s32 %s413, 1
      %s415 = scalar_select %p412, %s413, %s414
      %p418 = pneg %p412
      %p419 = scmp.eq.s32.totalorder %s39, 1
      %p420 = por %p418, %p419
      %p421 = scmp.ne.s32.totalorder %s413, %s416
      %p422 = scmp.eq.s32.totalorder %s39, 0
      %p423 = por %p421, %p422
      %p424 = scmp.ne.s32.totalorder %s413, %s416
      %p425 = scmp.eq.s32.totalorder %s44, 1
      %p426 = por %p424, %p425
      %p427 = scmp.ne.s32.totalorder %s416, %s417
      %p428 = scmp.eq.s32.totalorder %s44, 0
      %p429 = por %p427, %p428
      %p430 = scmp.ne.s32.totalorder %s416, %s417
      %p431 = scmp.eq.s32.totalorder %s45, 1
      %p432 = por %p430, %p431
      %p434 = scmp.ne.s32.totalorder %s417, %s433
      %p435 = scmp.eq.s32.totalorder %s45, 0
      %p436 = por %p434, %p435
      %s437 = ssub.s32 %s39, %s46
      %p438 = scmp.eq.s32.totalorder %s437, 0
      %s440 = sadd.s32 %s439, 1
      %s441 = scalar_select %p438, %s439, %s440
      %p444 = pneg %p438
      %p445 = scmp.eq.s32.totalorder %s39, 1
      %p446 = por %p444, %p445
      %p447 = scmp.ne.s32.totalorder %s439, %s442
      %p448 = scmp.eq.s32.totalorder %s39, 0
      %p449 = por %p447, %p448
      %p450 = scmp.ne.s32.totalorder %s439, %s442
      %p451 = scmp.eq.s32.totalorder %s44, 1
      %p452 = por %p450, %p451
      %p453 = scmp.ne.s32.totalorder %s442, %s443
      %p454 = scmp.eq.s32.totalorder %s44, 0
      %p455 = por %p453, %p454
      %p456 = scmp.ne.s32.totalorder %s442, %s443
      %p457 = scmp.eq.s32.totalorder %s45, 1
      %p458 = por %p456, %p457
      %p460 = scmp.ne.s32.totalorder %s443, %s459
      %p461 = scmp.eq.s32.totalorder %s45, 0
      %p462 = por %p460, %p461
      %s463 = ssub.s32 %s39, %s46
      %p464 = scmp.eq.s32.totalorder %s463, 0
      %s466 = sadd.s32 %s465, 1
      %s467 = scalar_select %p464, %s465, %s466
      %p470 = pneg %p464
      %p471 = scmp.eq.s32.totalorder %s39, 1
      %p472 = por %p470, %p471
      %p473 = scmp.ne.s32.totalorder %s465, %s468
      %p474 = scmp.eq.s32.totalorder %s39, 0
      %p475 = por %p473, %p474
      %p476 = scmp.ne.s32.totalorder %s465, %s468
      %p477 = scmp.eq.s32.totalorder %s44, 1
      %p478 = por %p476, %p477
      %p479 = scmp.ne.s32.totalorder %s468, %s469
      %p480 = scmp.eq.s32.totalorder %s44, 0
      %p481 = por %p479, %p480
      %p482 = scmp.ne.s32.totalorder %s468, %s469
      %p483 = scmp.eq.s32.totalorder %s45, 1
      %p484 = por %p482, %p483
      %p486 = scmp.ne.s32.totalorder %s469, %s485
      %p487 = scmp.eq.s32.totalorder %s45, 0
      %p488 = por %p486, %p487
      %s489 = ssub.s32 %s39, %s46
      %p490 = scmp.eq.s32.totalorder %s489, 0
      %s492 = sadd.s32 %s491, 1
      %s493 = scalar_select %p490, %s491, %s492
      %p496 = pneg %p490
      %p497 = scmp.eq.s32.totalorder %s39, 1
      %p498 = por %p496, %p497
      %p499 = scmp.ne.s32.totalorder %s491, %s494
      %p500 = scmp.eq.s32.totalorder %s39, 0
      %p501 = por %p499, %p500
      %p502 = scmp.ne.s32.totalorder %s491, %s494
      %p503 = scmp.eq.s32.totalorder %s44, 1
      %p504 = por %p502, %p503
      %p505 = scmp.ne.s32.totalorder %s494, %s495
      %p506 = scmp.eq.s32.totalorder %s44, 0
      %p507 = por %p505, %p506
      %p508 = scmp.ne.s32.totalorder %s494, %s495
      %p509 = scmp.eq.s32.totalorder %s45, 1
      %p510 = por %p508, %p509
      %p512 = scmp.ne.s32.totalorder %s495, %s511
      %p513 = scmp.eq.s32.totalorder %s45, 0
      %p514 = por %p512, %p513
      %s515 = ssub.s32 %s39, %s46
      %p516 = scmp.eq.s32.totalorder %s515, 0
      %s518 = sadd.s32 %s517, 1
      %s519 = scalar_select %p516, %s517, %s518
      %p522 = pneg %p516
      %p523 = scmp.eq.s32.totalorder %s39, 1
      %p524 = por %p522, %p523
      %p525 = scmp.ne.s32.totalorder %s517, %s520
      %p526 = scmp.eq.s32.totalorder %s39, 0
      %p527 = por %p525, %p526
      %p528 = scmp.ne.s32.totalorder %s517, %s520
      %p529 = scmp.eq.s32.totalorder %s44, 1
      %p530 = por %p528, %p529
      %p531 = scmp.ne.s32.totalorder %s520, %s521
      %p532 = scmp.eq.s32.totalorder %s44, 0
      %p533 = por %p531, %p532
      %p534 = scmp.ne.s32.totalorder %s520, %s521
      %p535 = scmp.eq.s32.totalorder %s45, 1
      %p536 = por %p534, %p535
      %p538 = scmp.ne.s32.totalorder %s521, %s537
      %p539 = scmp.eq.s32.totalorder %s45, 0
      %p540 = por %p538, %p539
      %p541 = scmp.le.s32.totalorder 1, %s39
      %p542 = scmp.lt.s32.totalorder %s39, 3
      %p543 = pnand %p541, %p542
      %p544 = pneg %p543
      // Predicated region
      $region9: #{tpu_custom_call.1} parent=5 // pred_check
        _
      $region10: #{tpu_custom_call.1} parent=5 // pred_check_branch
        %546 = sbr.rel (%p543) target = $region12
      $region11: #{tpu_custom_call.1} parent=5 // pred_region
        %s547 = ssub.s32 %s39, 1
      $region12: #{tpu_custom_call.1} parent=5 // pred_fallthru
        _
      %p548 = scmp.lt.s32.totalorder %s39, 2
      // Predicated region
      $region13: #{tpu_custom_call.1} parent=5 // pred_check
        %p549 = pneg %p548
      $region14: #{tpu_custom_call.1} parent=5 // pred_check_branch
        %551 = sbr.rel (%p549) target = $region16
      $region15: #{tpu_custom_call.1} parent=5 // pred_region
        // Predicated region
        $region17: #{tpu_custom_call.1} parent=15 // pred_check
          %p552 = pneg %p59
        $region18: #{tpu_custom_call.1} parent=15 // pred_check_branch
          %554 = sbr.rel (%p552) target = $region20
        $region19: #{tpu_custom_call.1} parent=15 // pred_region
          %p555 = scmp.lt.s32.totalorder %s39, 1
          %s556 = scalar_select %p555, %s39, 1
          %s557 = smul.addr %s556, 8
          %s558 = smul.addr %s557, 4
          %s559 = scalar_lea.vmem %s0, %s558
        $region20: #{tpu_custom_call.1} parent=15 // pred_fallthru
          _
        // Predicated region
        $region21: #{tpu_custom_call.1} parent=15 // pred_check
          %p560 = pneg %p85
        $region22: #{tpu_custom_call.1} parent=15 // pred_check_branch
          %562 = sbr.rel (%p560) target = $region24
        $region23: #{tpu_custom_call.1} parent=15 // pred_region
          %p563 = scmp.lt.s32.totalorder %s39, 1
          %s564 = scalar_select %p563, %s39, 1
          %s565 = smul.addr %s564, 2
          %s566 = smul.addr %s565, 8
          %s567 = scalar_lea.vmem %s1, %s566
        $region24: #{tpu_custom_call.1} parent=15 // pred_fallthru
          _
        // Predicated region
        $region25: #{tpu_custom_call.1} parent=15 // pred_check
          %p568 = pneg %p111
        $region26: #{tpu_custom_call.1} parent=15 // pred_check_branch
          %570 = sbr.rel (%p568) target = $region28
        $region27: #{tpu_custom_call.1} parent=15 // pred_region
          %p571 = scmp.lt.s32.totalorder %s39, 1
          %s572 = scalar_select %p571, %s39, 1
          %s573 = smul.addr %s572, 8
          %s574 = smul.addr %s573, 4
          %s575 = scalar_lea.vmem %s2, %s574
        $region28: #{tpu_custom_call.1} parent=15 // pred_fallthru
          _
        // Predicated region
        $region29: #{tpu_custom_call.1} parent=15 // pred_check
          %p576 = pneg %p137
        $region30: #{tpu_custom_call.1} parent=15 // pred_check_branch
          %578 = sbr.rel (%p576) target = $region32
        $region31: #{tpu_custom_call.1} parent=15 // pred_region
          %s579 = sand.u32 %s127, 1
          %s580 = scalar_lea.sflag [#allocation5], %s579
          %s581 = sand.u32 %s127, 1
          %s582 = smul.addr %s581, 16
          %s583 = scalar_lea.vmem [#allocation4], %s582
          %s585 = ssub.s32 256, 256
          %586 = vsyncadd %s580, %s585
          %s587 = smul.addr %s39, 4
          %s588 = smul.addr %s587, 64
          %s589 = scalar_lea.hbm %s3, %s588
          %s590 = sshll.u32 %s583, 4
          %s591 = int_to_ptr.vmem [resolvable:$true] %s590
          %596 = dma.hbm_to_vmem [thread:$0]  %s589, 256, %s591, %s580, 64, 64, 4
        $region32: #{tpu_custom_call.1} parent=15 // pred_fallthru
          _
        // Predicated region
        $region33: #{tpu_custom_call.1} parent=15 // pred_check
          %p597 = pneg %p163
        $region34: #{tpu_custom_call.1} parent=15 // pred_check_branch
          %599 = sbr.rel (%p597) target = $region36
        $region35: #{tpu_custom_call.1} parent=15 // pred_region
          %p600 = scmp.lt.s32.totalorder %s39, 1
          %s601 = scalar_select %p600, %s39, 1
          %s602 = scalar_lea.vmem %s4, %s601
        $region36: #{tpu_custom_call.1} parent=15 // pred_fallthru
          _
        // Predicated region
        $region37: #{tpu_custom_call.1} parent=15 // pred_check
          %p603 = pneg %p189
        $region38: #{tpu_custom_call.1} parent=15 // pred_check_branch
          %605 = sbr.rel (%p603) target = $region40
        $region39: #{tpu_custom_call.1} parent=15 // pred_region
          %p606 = scmp.lt.s32.totalorder %s39, 1
          %s607 = scalar_select %p606, %s39, 1
          %s608 = scalar_lea.vmem %s5, %s607
        $region40: #{tpu_custom_call.1} parent=15 // pred_fallthru
          _
        // Predicated region
        $region41: #{tpu_custom_call.1} parent=15 // pred_check
          %p609 = pneg %p215
        $region42: #{tpu_custom_call.1} parent=15 // pred_check_branch
          %611 = sbr.rel (%p609) target = $region44
        $region43: #{tpu_custom_call.1} parent=15 // pred_region
          %s612 = sand.u32 %s39, 1
          %s613 = scalar_lea.sflag [#allocation8], %s612
          %s614 = sand.u32 %s205, 1
          %s615 = smul.addr %s614, 16
          %s616 = scalar_lea.vmem [#allocation7], %s615
          %s618 = ssub.s32 256, 256
          %619 = vsyncadd %s613, %s618
          %s620 = smul.addr %s39, 4
          %s621 = smul.addr %s620, 64
          %s622 = scalar_lea.hbm %s6, %s621
          %s623 = sshll.u32 %s616, 4
          %s624 = int_to_ptr.vmem [resolvable:$true] %s623
          %629 = dma.hbm_to_vmem [thread:$0]  %s622, 256, %s624, %s613, 64, 64, 4
        $region44: #{tpu_custom_call.1} parent=15 // pred_fallthru
          _
        // Predicated region
        $region45: #{tpu_custom_call.1} parent=15 // pred_check
          %p630 = pneg %p241
        $region46: #{tpu_custom_call.1} parent=15 // pred_check_branch
          %632 = sbr.rel (%p630) target = $region48
        $region47: #{tpu_custom_call.1} parent=15 // pred_region
          %s633 = sand.u32 %s39, 1
          %s634 = scalar_lea.sflag [#allocation8], %s633
          %s635 = sand.u32 %s231, 1
          %s636 = smul.addr %s635, 16
          %s637 = scalar_lea.vmem [#allocation9], %s636
          %s639 = ssub.s32 256, 256
          %640 = vsyncadd %s634, %s639
          %s641 = smul.addr %s39, 4
          %s642 = smul.addr %s641, 64
          %s643 = scalar_lea.hbm %s7, %s642
          %s644 = sshll.u32 %s637, 4
          %s645 = int_to_ptr.vmem [resolvable:$true] %s644
          %650 = dma.hbm_to_vmem [thread:$0]  %s643, 256, %s645, %s634, 64, 64, 4
        $region48: #{tpu_custom_call.1} parent=15 // pred_fallthru
          _
        // Predicated region
        $region49: #{tpu_custom_call.1} parent=15 // pred_check
          %p651 = pneg %p267
        $region50: #{tpu_custom_call.1} parent=15 // pred_check_branch
          %653 = sbr.rel (%p651) target = $region52
        $region51: #{tpu_custom_call.1} parent=15 // pred_region
          %p654 = scmp.lt.s32.totalorder %s39, 1
          %s655 = scalar_select %p654, %s39, 1
          %s656 = scalar_lea.vmem %s8, %s655
        $region52: #{tpu_custom_call.1} parent=15 // pred_fallthru
          _
        // Predicated region
        $region53: #{tpu_custom_call.1} parent=15 // pred_check
          %p657 = pneg %p293
        $region54: #{tpu_custom_call.1} parent=15 // pred_check_branch
          %659 = sbr.rel (%p657) target = $region56
        $region55: #{tpu_custom_call.1} parent=15 // pred_region
          %p660 = scmp.lt.s32.totalorder %s39, 1
          %s661 = scalar_select %p660, %s39, 1
          %s662 = scalar_lea.vmem %s9, %s661
        $region56: #{tpu_custom_call.1} parent=15 // pred_fallthru
          _
        // Predicated region
        $region57: #{tpu_custom_call.1} parent=15 // pred_check
          %p663 = pneg %p319
        $region58: #{tpu_custom_call.1} parent=15 // pred_check_branch
          %665 = sbr.rel (%p663) target = $region60
        $region59: #{tpu_custom_call.1} parent=15 // pred_region
          %s666 = sand.u32 %s39, 1
          %s667 = scalar_lea.sflag [#allocation11], %s666
          %s668 = sand.u32 %s309, 1
          %s669 = smul.addr %s668, 256
          %s670 = scalar_lea.vmem [#allocation10], %s669
          %s672 = ssub.s32 4096, 4096
          %673 = vsyncadd %s667, %s672
          %s674 = smul.addr %s39, 64
          %s675 = smul.addr %s674, 64
          %s676 = scalar_lea.hbm %s10, %s675
          %s677 = sshll.u32 %s670, 4
          %s678 = int_to_ptr.vmem [resolvable:$true] %s677
          %683 = dma.hbm_to_vmem [thread:$0]  %s676, 4096, %s678, %s667, 128, 128, 8
        $region60: #{tpu_custom_call.1} parent=15 // pred_fallthru
          _
        // Predicated region
        $region61: #{tpu_custom_call.1} parent=15 // pred_check
          %p684 = pneg %p345
        $region62: #{tpu_custom_call.1} parent=15 // pred_check_branch
          %686 = sbr.rel (%p684) target = $region64
        $region63: #{tpu_custom_call.1} parent=15 // pred_region
          %p687 = scmp.lt.s32.totalorder %s39, 1
          %s688 = scalar_select %p687, %s39, 1
          %s689 = smul.addr %s688, 2
          %s690 = scalar_lea.vmem %s11, %s689
        $region64: #{tpu_custom_call.1} parent=15 // pred_fallthru
          _
        // Predicated region
        $region65: #{tpu_custom_call.1} parent=15 // pred_check
          %p691 = pneg %p371
        $region66: #{tpu_custom_call.1} parent=15 // pred_check_branch
          %693 = sbr.rel (%p691) target = $region68
        $region67: #{tpu_custom_call.1} parent=15 // pred_region
          %s694 = sand.u32 %s39, 1
          %s695 = scalar_lea.sflag [#allocation11], %s694
          %s696 = sand.u32 %s361, 1
          %s697 = smul.addr %s696, 96
          %s698 = scalar_lea.vmem [#allocation12], %s697
          %s700 = ssub.s32 1536, 1536
          %701 = vsyncadd %s695, %s700
          %s702 = smul.addr %s39, 24
          %s703 = smul.addr %s702, 64
          %s704 = scalar_lea.hbm %s12, %s703
          %s705 = sshll.u32 %s698, 4
          %s706 = int_to_ptr.vmem [resolvable:$true] %s705
          %711 = dma.hbm_to_vmem [thread:$0]  %s704, 1536, %s706, %s695, 64, 64, 4
        $region68: #{tpu_custom_call.1} parent=15 // pred_fallthru
          _
        // Predicated region
        $region69: #{tpu_custom_call.1} parent=15 // pred_check
          %p712 = pneg %p397
        $region70: #{tpu_custom_call.1} parent=15 // pred_check_branch
          %714 = sbr.rel (%p712) target = $region72
        $region71: #{tpu_custom_call.1} parent=15 // pred_region
          %s715 = sand.u32 %s39, 1
          %s716 = scalar_lea.sflag [#allocation14], %s715
          %s717 = sand.u32 %s387, 1
          %s718 = smul.addr %s717, 16
          %s719 = scalar_lea.vmem [#allocation13], %s718
          %s721 = ssub.s32 256, 256
          %722 = vsyncadd %s716, %s721
          %s723 = smul.addr %s39, 4
          %s724 = smul.addr %s723, 64
          %s725 = scalar_lea.hbm %s13, %s724
          %s726 = sshll.u32 %s719, 4
          %s727 = int_to_ptr.vmem [resolvable:$true] %s726
          %732 = dma.hbm_to_vmem [thread:$0]  %s725, 256, %s727, %s716, 64, 64, 4
        $region72: #{tpu_custom_call.1} parent=15 // pred_fallthru
          _
        // Predicated region
        $region73: #{tpu_custom_call.1} parent=15 // pred_check
          %p733 = pneg %p423
        $region74: #{tpu_custom_call.1} parent=15 // pred_check_branch
          %735 = sbr.rel (%p733) target = $region76
        $region75: #{tpu_custom_call.1} parent=15 // pred_region
          %s736 = sand.u32 %s39, 1
          %s737 = scalar_lea.sflag [#allocation14], %s736
          %s738 = sand.u32 %s413, 1
          %s739 = smul.addr %s738, 16
          %s740 = scalar_lea.vmem [#allocation15], %s739
          %s742 = ssub.s32 256, 256
          %743 = vsyncadd %s737, %s742
          %s744 = smul.addr %s39, 4
          %s745 = smul.addr %s744, 64
          %s746 = scalar_lea.hbm %s14, %s745
          %s747 = sshll.u32 %s740, 4
          %s748 = int_to_ptr.vmem [resolvable:$true] %s747
          %753 = dma.hbm_to_vmem [thread:$0]  %s746, 256, %s748, %s737, 64, 64, 4
        $region76: #{tpu_custom_call.1} parent=15 // pred_fallthru
          _
        // Predicated region
        $region77: #{tpu_custom_call.1} parent=15 // pred_check
          %p754 = pneg %p449
        $region78: #{tpu_custom_call.1} parent=15 // pred_check_branch
          %756 = sbr.rel (%p754) target = $region80
        $region79: #{tpu_custom_call.1} parent=15 // pred_region
          %p757 = scmp.lt.s32.totalorder %s39, 1
          %s758 = scalar_select %p757, %s39, 1
          %s759 = scalar_lea.vmem %s15, %s758
        $region80: #{tpu_custom_call.1} parent=15 // pred_fallthru
          _
        // Predicated region
        $region81: #{tpu_custom_call.1} parent=15 // pred_check
          %p760 = pneg %p475
        $region82: #{tpu_custom_call.1} parent=15 // pred_check_branch
          %762 = sbr.rel (%p760) target = $region84
        $region83: #{tpu_custom_call.1} parent=15 // pred_region
          %p763 = scmp.lt.s32.totalorder %s39, 1
          %s764 = scalar_select %p763, %s39, 1
          %s765 = smul.addr %s764, 16
          %s766 = smul.addr %s765, 4
          %s767 = scalar_lea.vmem %s16, %s766
        $region84: #{tpu_custom_call.1} parent=15 // pred_fallthru
          _
        // Predicated region
        $region85: #{tpu_custom_call.1} parent=15 // pred_check
          %p768 = pneg %p501
        $region86: #{tpu_custom_call.1} parent=15 // pred_check_branch
          %770 = sbr.rel (%p768) target = $region88
        $region87: #{tpu_custom_call.1} parent=15 // pred_region
          %p771 = scmp.lt.s32.totalorder %s39, 1
          %s772 = scalar_select %p771, %s39, 1
          %s773 = scalar_lea.vmem %s17, %s772
        $region88: #{tpu_custom_call.1} parent=15 // pred_fallthru
          _
      $region16: #{tpu_custom_call.1} parent=5 // pred_fallthru
        _
      %p774 = scmp.le.s32.totalorder 1, %s39
      %p775 = scmp.lt.s32.totalorder %s39, 3
      %p776 = pnand %p774, %p775
      %p777 = pneg %p776
      // Predicated region
      $region89: #{tpu_custom_call.1} parent=5 // pred_check
        _
      $region90: #{tpu_custom_call.1} parent=5 // pred_check_branch
        %779 = sbr.rel (%p776) target = $region92
      $region91: #{tpu_custom_call.1} parent=5 // pred_region
        %s780 = ssub.s32 %s39, 1
        %s781 = sand.u32 %s130, 1
        %s782 = scalar_lea.sflag [#allocation5], %s781
        %s783 = sand.u32 %s130, 1
        %s784 = smul.addr %s783, 16
        %s785 = scalar_lea.vmem [#allocation4], %s784
        // Predicated region
        $region93: #{tpu_custom_call.1} parent=91 // pred_check
          %p786 = pneg %p143
        $region94: #{tpu_custom_call.1} parent=91 // pred_check_branch
          %788 = sbr.rel (%p786) target = $region96
        $region95: #{tpu_custom_call.1} parent=91 // pred_region
          %789 = dma.done %s782, 256
        $region96: #{tpu_custom_call.1} parent=91 // pred_fallthru
          _
        %s790 = sand.u32 %s44, 1
        %s791 = scalar_lea.sflag [#allocation8], %s790
        %s792 = sand.u32 %s208, 1
        %s793 = smul.addr %s792, 16
        %s794 = scalar_lea.vmem [#allocation7], %s793
        // Predicated region
        $region97: #{tpu_custom_call.1} parent=91 // pred_check
          %p795 = pneg %p221
        $region98: #{tpu_custom_call.1} parent=91 // pred_check_branch
          %797 = sbr.rel (%p795) target = $region100
        $region99: #{tpu_custom_call.1} parent=91 // pred_region
          %798 = dma.done %s791, 256
        $region100: #{tpu_custom_call.1} parent=91 // pred_fallthru
          _
        %s799 = sand.u32 %s44, 1
        %s800 = scalar_lea.sflag [#allocation8], %s799
        %s801 = sand.u32 %s234, 1
        %s802 = smul.addr %s801, 16
        %s803 = scalar_lea.vmem [#allocation9], %s802
        // Predicated region
        $region101: #{tpu_custom_call.1} parent=91 // pred_check
          %p804 = pneg %p247
        $region102: #{tpu_custom_call.1} parent=91 // pred_check_branch
          %806 = sbr.rel (%p804) target = $region104
        $region103: #{tpu_custom_call.1} parent=91 // pred_region
          %807 = dma.done %s800, 256
        $region104: #{tpu_custom_call.1} parent=91 // pred_fallthru
          _
        %s808 = sand.u32 %s44, 1
        %s809 = scalar_lea.sflag [#allocation11], %s808
        %s810 = sand.u32 %s312, 1
        %s811 = smul.addr %s810, 256
        %s812 = scalar_lea.vmem [#allocation10], %s811
        // Predicated region
        $region105: #{tpu_custom_call.1} parent=91 // pred_check
          %p813 = pneg %p325
        $region106: #{tpu_custom_call.1} parent=91 // pred_check_branch
          %815 = sbr.rel (%p813) target = $region108
        $region107: #{tpu_custom_call.1} parent=91 // pred_region
          %816 = dma.done %s809, 4096
        $region108: #{tpu_custom_call.1} parent=91 // pred_fallthru
          _
        %s817 = sand.u32 %s44, 1
        %s818 = scalar_lea.sflag [#allocation11], %s817
        %s819 = sand.u32 %s364, 1
        %s820 = smul.addr %s819, 96
        %s821 = scalar_lea.vmem [#allocation12], %s820
        // Predicated region
        $region109: #{tpu_custom_call.1} parent=91 // pred_check
          %p822 = pneg %p377
        $region110: #{tpu_custom_call.1} parent=91 // pred_check_branch
          %824 = sbr.rel (%p822) target = $region112
        $region111: #{tpu_custom_call.1} parent=91 // pred_region
          %825 = dma.done %s818, 1536
        $region112: #{tpu_custom_call.1} parent=91 // pred_fallthru
          _
        %s826 = sand.u32 %s44, 1
        %s827 = scalar_lea.sflag [#allocation14], %s826
        %s828 = sand.u32 %s390, 1
        %s829 = smul.addr %s828, 16
        %s830 = scalar_lea.vmem [#allocation13], %s829
        // Predicated region
        $region113: #{tpu_custom_call.1} parent=91 // pred_check
          %p831 = pneg %p403
        $region114: #{tpu_custom_call.1} parent=91 // pred_check_branch
          %833 = sbr.rel (%p831) target = $region116
        $region115: #{tpu_custom_call.1} parent=91 // pred_region
          %834 = dma.done %s827, 256
        $region116: #{tpu_custom_call.1} parent=91 // pred_fallthru
          _
        %s835 = sand.u32 %s44, 1
        %s836 = scalar_lea.sflag [#allocation14], %s835
        %s837 = sand.u32 %s416, 1
        %s838 = smul.addr %s837, 16
        %s839 = scalar_lea.vmem [#allocation15], %s838
        // Predicated region
        $region117: #{tpu_custom_call.1} parent=91 // pred_check
          %p840 = pneg %p429
        $region118: #{tpu_custom_call.1} parent=91 // pred_check_branch
          %842 = sbr.rel (%p840) target = $region120
        $region119: #{tpu_custom_call.1} parent=91 // pred_region
          %843 = dma.done %s836, 256
        $region120: #{tpu_custom_call.1} parent=91 // pred_fallthru
          _
        %p844 = scmp.lt.s32.totalorder %s44, 1
        %s845 = scalar_select %p844, %s44, 1
        %s846 = smul.addr %s845, 8
        %s847 = smul.addr %s846, 4
        %s848 = scalar_lea.vmem %s0, %s847
        %p849 = pneg %p65
        %p850 = pneg %p62
        %p851 = scmp.lt.s32.totalorder %s44, 1
        %s852 = scalar_select %p851, %s44, 1
        %s853 = smul.addr %s852, 2
        %s854 = smul.addr %s853, 8
        %s855 = scalar_lea.vmem %s1, %s854
        %p856 = pneg %p91
        %p857 = pneg %p88
        %p858 = scmp.lt.s32.totalorder %s44, 1
        %s859 = scalar_select %p858, %s44, 1
        %s860 = smul.addr %s859, 8
        %s861 = smul.addr %s860, 4
        %s862 = scalar_lea.vmem %s2, %s861
        %p863 = pneg %p117
        %p864 = pneg %p114
        %s865 = sand.u32 %s130, 1
        %s866 = scalar_lea.sflag [#allocation5], %s865
        %s867 = sand.u32 %s130, 1
        %s868 = smul.addr %s867, 16
        %s869 = scalar_lea.vmem [#allocation4], %s868
        %p870 = pneg %p143
        %p871 = pneg %p140
        %p872 = scmp.lt.s32.totalorder %s44, 1
        %s873 = scalar_select %p872, %s44, 1
        %s874 = scalar_lea.vmem %s4, %s873
        %p875 = pneg %p169
        %p876 = pneg %p166
        %p877 = scmp.lt.s32.totalorder %s44, 1
        %s878 = scalar_select %p877, %s44, 1
        %s879 = scalar_lea.vmem %s5, %s878
        %p880 = pneg %p195
        %p881 = pneg %p192
        %s882 = sand.u32 %s44, 1
        %s883 = scalar_lea.sflag [#allocation8], %s882
        %s884 = sand.u32 %s208, 1
        %s885 = smul.addr %s884, 16
        %s886 = scalar_lea.vmem [#allocation7], %s885
        %p887 = pneg %p221
        %p888 = pneg %p218
        %s889 = sand.u32 %s44, 1
        %s890 = scalar_lea.sflag [#allocation8], %s889
        %s891 = sand.u32 %s234, 1
        %s892 = smul.addr %s891, 16
        %s893 = scalar_lea.vmem [#allocation9], %s892
        %p894 = pneg %p247
        %p895 = pneg %p244
        %p896 = scmp.lt.s32.totalorder %s44, 1
        %s897 = scalar_select %p896, %s44, 1
        %s898 = scalar_lea.vmem %s8, %s897
        %p899 = pneg %p273
        %p900 = pneg %p270
        %p901 = scmp.lt.s32.totalorder %s44, 1
        %s902 = scalar_select %p901, %s44, 1
        %s903 = scalar_lea.vmem %s9, %s902
        %p904 = pneg %p299
        %p905 = pneg %p296
        %s906 = sand.u32 %s44, 1
        %s907 = scalar_lea.sflag [#allocation11], %s906
        %s908 = sand.u32 %s312, 1
        %s909 = smul.addr %s908, 256
        %s910 = scalar_lea.vmem [#allocation10], %s909
        %p911 = pneg %p325
        %p912 = pneg %p322
        %p913 = scmp.lt.s32.totalorder %s44, 1
        %s914 = scalar_select %p913, %s44, 1
        %s915 = smul.addr %s914, 2
        %s916 = scalar_lea.vmem %s11, %s915
        %p917 = pneg %p351
        %p918 = pneg %p348
        %s919 = sand.u32 %s44, 1
        %s920 = scalar_lea.sflag [#allocation11], %s919
        %s921 = sand.u32 %s364, 1
        %s922 = smul.addr %s921, 96
        %s923 = scalar_lea.vmem [#allocation12], %s922
        %p924 = pneg %p377
        %p925 = pneg %p374
        %s926 = sand.u32 %s44, 1
        %s927 = scalar_lea.sflag [#allocation14], %s926
        %s928 = sand.u32 %s390, 1
        %s929 = smul.addr %s928, 16
        %s930 = scalar_lea.vmem [#allocation13], %s929
        %p931 = pneg %p403
        %p932 = pneg %p400
        %s933 = sand.u32 %s44, 1
        %s934 = scalar_lea.sflag [#allocation14], %s933
        %s935 = sand.u32 %s416, 1
        %s936 = smul.addr %s935, 16
        %s937 = scalar_lea.vmem [#allocation15], %s936
        %p938 = pneg %p429
        %p939 = pneg %p426
        %p940 = scmp.lt.s32.totalorder %s44, 1
        %s941 = scalar_select %p940, %s44, 1
        %s942 = scalar_lea.vmem %s15, %s941
        %p943 = pneg %p455
        %p944 = pneg %p452
        %p945 = scmp.lt.s32.totalorder %s44, 1
        %s946 = scalar_select %p945, %s44, 1
        %s947 = smul.addr %s946, 16
        %s948 = smul.addr %s947, 4
        %s949 = scalar_lea.vmem %s16, %s948
        %p950 = pneg %p481
        %p951 = pneg %p478
        %p952 = scmp.lt.s32.totalorder %s44, 1
        %s953 = scalar_select %p952, %s44, 1
        %s954 = scalar_lea.vmem %s17, %s953
        %p955 = pneg %p507
        %p956 = pneg %p504
        %p957 = pneg %p533
        %p958 = pneg %p530
        %s959 = sand.u32 %s520, 1
        %s960 = scalar_lea.sflag [#allocation6], %s959
        %s961 = sand.u32 %s520, 1
        %s962 = smul.addr %s961, 8
        %s963 = scalar_lea.vmem [#allocation16], %s962
        %p964 = scmp.lt.s32.totalorder %s44, 1
        %s965 = scalar_select %p964, %s44, 1
        %s966 = smul.addr %s965, 8
        %s967 = smul.addr %s966, 4
        %s968 = scalar_lea.vmem %s0, %s967
        %p969 = scmp.lt.s32.totalorder %s44, 1
        %s970 = scalar_select %p969, %s44, 1
        %s971 = smul.addr %s970, 2
        %s972 = smul.addr %s971, 8
        %s973 = scalar_lea.vmem %s1, %s972
        %p974 = scmp.lt.s32.totalorder %s44, 1
        %s975 = scalar_select %p974, %s44, 1
        %s976 = smul.addr %s975, 8
        %s977 = smul.addr %s976, 4
        %s978 = scalar_lea.vmem %s2, %s977
        %p979 = scmp.lt.s32.totalorder %s44, 1
        %s980 = scalar_select %p979, %s44, 1
        %s981 = scalar_lea.vmem %s4, %s980
        %p982 = scmp.lt.s32.totalorder %s44, 1
        %s983 = scalar_select %p982, %s44, 1
        %s984 = scalar_lea.vmem %s5, %s983
        %p985 = scmp.lt.s32.totalorder %s44, 1
        %s986 = scalar_select %p985, %s44, 1
        %s987 = scalar_lea.vmem %s8, %s986
        %p988 = scmp.lt.s32.totalorder %s44, 1
        %s989 = scalar_select %p988, %s44, 1
        %s990 = scalar_lea.vmem %s9, %s989
        %p991 = scmp.lt.s32.totalorder %s44, 1
        %s992 = scalar_select %p991, %s44, 1
        %s993 = smul.addr %s992, 2
        %s994 = scalar_lea.vmem %s11, %s993
        %p995 = scmp.lt.s32.totalorder %s44, 1
        %s996 = scalar_select %p995, %s44, 1
        %s997 = scalar_lea.vmem %s15, %s996
        %p998 = scmp.lt.s32.totalorder %s44, 1
        %s999 = scalar_select %p998, %s44, 1
        %s1000 = smul.addr %s999, 16
        %s1001 = smul.addr %s1000, 4
        %s1002 = scalar_lea.vmem %s16, %s1001
        %p1003 = scmp.lt.s32.totalorder %s44, 1
        %s1004 = scalar_select %p1003, %s44, 1
        %s1005 = scalar_lea.vmem %s17, %s1004
        %v1007 = vld [vmem:[%s968] sm:$0xf]
        %v1008 = vld [vmem:[%s968 + $0x4] sm:$0xf]
        %v1009 = vld [vmem:[%s968 + $0x8] sm:$0xf]
        %v1010 = vld [vmem:[%s968 + $0xc] sm:$0xf]
        %v1011 = vld [vmem:[%s968 + $0x10] sm:$0xf]
        %v1012 = vld [vmem:[%s968 + $0x14] sm:$0xf]
        %v1013 = vld [vmem:[%s968 + $0x18] sm:$0xf]
        %v1014 = vld [vmem:[%s968 + $0x1c] sm:$0xf]
        %v1015 = vld [vmem:[%s978] sm:$0xf]
        %v1016 = vld [vmem:[%s978 + $0x4] sm:$0xf]
        %v1017 = vld [vmem:[%s978 + $0x8] sm:$0xf]
        %v1018 = vld [vmem:[%s978 + $0xc] sm:$0xf]
        %v1019 = vld [vmem:[%s978 + $0x10] sm:$0xf]
        %v1020 = vld [vmem:[%s978 + $0x14] sm:$0xf]
        %v1021 = vld [vmem:[%s978 + $0x18] sm:$0xf]
        %v1022 = vld [vmem:[%s978 + $0x1c] sm:$0xf]
        %v1023 = vld [vmem:[%s981] sm:$0x1]
        %v1025 = vlaneseq
        %v1026 = vshrl.u32 %v1025, 7
        %v1027 = vsub.s32 0, %v1026
        %v1028 = vrot.slane %v1023, %v1027
        %v1038 = vunpack.c.l.b16 %v1007
        %v1039 = vunpack.c.l.b16 %v1008
        %v1040 = vunpack.c.l.b16 %v1009
        %v1041 = vunpack.c.l.b16 %v1010
        %v1042 = vunpack.c.l.b16 %v1011
        %v1043 = vunpack.c.l.b16 %v1012
        %v1044 = vunpack.c.l.b16 %v1013
        %v1045 = vunpack.c.l.b16 %v1014
        %v1046 = vpack.c.b16 %v1039, %v1038
        %v1047 = vpack.c.b16 %v1041, %v1040
        %v1048 = vpack.c.b16 %v1043, %v1042
        %v1049 = vpack.c.b16 %v1045, %v1044
        %v1058 = vunpack.c.l.b16 %v1015
        %v1059 = vunpack.c.l.b16 %v1016
        %v1060 = vunpack.c.l.b16 %v1017
        %v1061 = vunpack.c.l.b16 %v1018
        %v1062 = vunpack.c.l.b16 %v1019
        %v1063 = vunpack.c.l.b16 %v1020
        %v1064 = vunpack.c.l.b16 %v1021
        %v1065 = vunpack.c.l.b16 %v1022
        %v1066 = vpack.c.b16 %v1059, %v1058
        %v1067 = vpack.c.b16 %v1061, %v1060
        %v1068 = vpack.c.b16 %v1063, %v1062
        %v1069 = vpack.c.b16 %v1065, %v1064
        %vm1074 = vcmask 523264
        %v1076 = vsel %vm1074, %v1046, 0
        %v1079 = vsel %vm1074, %v1047, 0
        %v1082 = vsel %vm1074, %v1048, 0
        %v1085 = vsel %vm1074, %v1049, 0
        %1087 = vmatprep.subr.bf16.mxu0 0
        %1088 = vmatpush1.bf16.msra.mxu0 0
        %1089 = vmatprep.subr.bf16.mxu0 0
        %1090 = vmatpush1.bf16.msra.mxu0 0
        %1091 = vmatprep.subr.bf16.mxu0 0
        %1092 = vmatpush1.bf16.msra.mxu0 0
        %1093 = vmatprep.subr.bf16.mxu0 0
        %1094 = vmatpush1.bf16.msra.mxu0 0
        %1095 = vmatprep.subr.bf16.mxu0 0
        %1096 = vmatpush1.bf16.msra.mxu0 %v1069
        %1097 = vmatprep.subr.bf16.mxu0 0
        %1098 = vmatpush1.bf16.msra.mxu0 %v1068
        %1099 = vmatprep.subr.bf16.mxu0 0
        %1100 = vmatpush1.bf16.msra.mxu0 %v1067
        %1101 = vmatprep.subr.bf16.mxu0 0
        %1102 = vmatpush1.bf16.msra.mxu0 %v1066
        %1103 = vmatprep.subr.bf16.mxu0 0
        %1104 = vmatpush2.bf16.msra.mxu0 0
        %1105 = vmatprep.subr.bf16.mxu0 0
        %1106 = vmatpush2.bf16.msra.mxu0 0
        %1107 = vmatprep.subr.bf16.mxu0 0
        %1108 = vmatpush2.bf16.msra.mxu0 0
        %1109 = vmatprep.subr.bf16.mxu0 0
        %1110 = vmatpush2.bf16.msra.mxu0 0
        %1111 = vmatprep.subr.bf16.mxu0 0
        %1112 = vmatpush2.bf16.msra.mxu0 0
        %1113 = vmatprep.subr.bf16.mxu0 0
        %1114 = vmatpush2.bf16.msra.mxu0 0
        %1115 = vmatprep.subr.bf16.mxu0 0
        %1116 = vmatpush2.bf16.msra.mxu0 0
        %1117 = vmatprep.subr.bf16.mxu0 0
        %1118 = vmatpush2.bf16.msra.mxu0 0
        %1119 = vmatprep.mubr.bf16.mxu0 0
        %1120 = vmatmul.mubr.bf16.gmra.mxu0 %v1076
        %v1121 = vpop.f32.mrf.mxu0
        %v1122 = vadd.f32 %v1028, %v1121
        %v1123 = vpop.f32.mrf.mxu0
        %v1124 = vpop.f32.mrf.mxu0
        %v1125 = vadd.f32 %v1028, %v1124
        %v1126 = vpop.f32.mrf.mxu0
        %1127 = vmatprep.mubr.bf16.mxu0 0
        %1128 = vmatmul.mubr.bf16.gmra.mxu0 %v1079
        %v1129 = vpop.f32.mrf.mxu0
        %v1130 = vadd.f32 %v1028, %v1129
        %v1131 = vpop.f32.mrf.mxu0
        %v1132 = vpop.f32.mrf.mxu0
        %v1133 = vadd.f32 %v1028, %v1132
        %v1134 = vpop.f32.mrf.mxu0
        %1135 = vmatprep.mubr.bf16.mxu0 0
        %1136 = vmatmul.mubr.bf16.gmra.mxu0 %v1082
        %v1137 = vpop.f32.mrf.mxu0
        %v1138 = vadd.f32 %v1028, %v1137
        %v1139 = vpop.f32.mrf.mxu0
        %v1140 = vpop.f32.mrf.mxu0
        %v1141 = vadd.f32 %v1028, %v1140
        %v1142 = vpop.f32.mrf.mxu0
        %1143 = vmatprep.mubr.bf16.mxu0 0
        %1144 = vmatmul.mubr.bf16.gmra.mxu0 %v1085
        %v1145 = vpop.f32.mrf.mxu0
        %v1146 = vadd.f32 %v1028, %v1145
        %v1147 = vpop.f32.mrf.mxu0
        %v1148 = vpop.f32.mrf.mxu0
        %v1149 = vadd.f32 %v1028, %v1148
        %v1150 = vpop.f32.mrf.mxu0
        %1151 = vdwg.mxu0
        %vm1152 = vcmask 785408
        %1153 = vst.msk [vmem:[#allocation2] sm:$0xff] %vm1152, %v1122
        %1154 = vst.msk [vmem:[#allocation2 + $0x8] sm:$0xff] %vm1152, %v1125
        %1155 = vst.msk [vmem:[#allocation2 + $0x10] sm:$0xff] %vm1152, %v1130
        %1156 = vst.msk [vmem:[#allocation2 + $0x18] sm:$0xff] %vm1152, %v1133
        %1157 = vst.msk [vmem:[#allocation2 + $0x20] sm:$0xff] %vm1152, %v1138
        %1158 = vst.msk [vmem:[#allocation2 + $0x28] sm:$0xff] %vm1152, %v1141
        %1159 = vst.msk [vmem:[#allocation2 + $0x30] sm:$0xff] %vm1152, %v1146
        %1160 = vst.msk [vmem:[#allocation2 + $0x38] sm:$0xff] %vm1152, %v1149
        %v1161 = vld [vmem:[%s785] sm:$0xf]
        %v1162 = vld [vmem:[%s785 + $0x4] sm:$0xf]
        %v1163 = vld [vmem:[%s785 + $0x8] sm:$0xf]
        %v1164 = vld [vmem:[%s785 + $0xc] sm:$0xf]
        %v1165 = vld [vmem:[%s803] sm:$0xf]
        %v1166 = vld [vmem:[%s803 + $0x4] sm:$0xf]
        %v1167 = vld [vmem:[%s803 + $0x8] sm:$0xf]
        %v1168 = vld [vmem:[%s803 + $0xc] sm:$0xf]
        %v1169 = vld [vmem:[%s984] sm:$0x1]
        %v1171 = vlaneseq
        %v1172 = vshrl.u32 %v1171, 7
        %v1173 = vsub.s32 0, %v1172
        %v1174 = vrot.slane %v1169, %v1173
        %v1176 = vld [vmem:[%s990] sm:$0x1]
        %v1178 = vlaneseq
        %v1179 = vshrl.u32 %v1178, 7
        %v1180 = vsub.s32 0, %v1179
        %v1181 = vrot.slane %v1176, %v1180
        %v1183 = vld [vmem:[%s973] sm:$0xff]
        loop: start=0, step=1, limit=4
        $region121: #{tpu_custom_call.1} parent=91 // loop_pre_header
          _
        $region122: #{tpu_custom_call.1} parent=91 // loop_header
          %s1185 = sphi 0, %s1189
          %p1186 = scmp.ge.s32.totalorder %s1185, 4
          %v1190 = vphi %v1183, %v1367
        $region123: #{tpu_custom_call.1} parent=91 // loop_header_branch
          %1188 = sbr.rel (%p1186) target = $region127
        $region124: #{tpu_custom_call.1} parent=91 // loop_body
          %s1191 = smul.u32 %s1185, 16
          %s1192 = scalar_lea.vmem [#allocation2], %s1191
          %v1193 = vld [vmem:[%s1192] sm:$0xff]
          %v1194 = vpack.c.bf16 %v1190, %v1190
          %v1199 = vunpack.c.l.b16 %v1161
          %v1200 = vunpack.c.l.b16 %v1162
          %v1201 = vunpack.c.l.b16 %v1163
          %v1202 = vunpack.c.l.b16 %v1164
          %v1203 = vpack.c.b16 %v1200, %v1199
          %v1204 = vpack.c.b16 %v1202, %v1201
          %vm1207 = vcmask 261120
          %v1209 = vsel %vm1207, %v1194, 0
          %1211 = vmatprep.subr.bf16.mxu0 0
          %1212 = vmatpush1.bf16.msra.mxu0 0
          %1213 = vmatprep.subr.bf16.mxu0 0
          %1214 = vmatpush1.bf16.msra.mxu0 0
          %1215 = vmatprep.subr.bf16.mxu0 0
          %1216 = vmatpush1.bf16.msra.mxu0 0
          %1217 = vmatprep.subr.bf16.mxu0 0
          %1218 = vmatpush1.bf16.msra.mxu0 0
          %1219 = vmatprep.subr.bf16.mxu0 0
          %1220 = vmatpush1.bf16.msra.mxu0 0
          %1221 = vmatprep.subr.bf16.mxu0 0
          %1222 = vmatpush1.bf16.msra.mxu0 0
          %1223 = vmatprep.subr.bf16.mxu0 0
          %1224 = vmatpush1.bf16.msra.mxu0 %v1204
          %1225 = vmatprep.subr.bf16.mxu0 0
          %1226 = vmatpush1.bf16.msra.mxu0 %v1203
          %1227 = vmatprep.subr.bf16.mxu0 0
          %1228 = vmatpush2.bf16.msra.mxu0 0
          %1229 = vmatprep.subr.bf16.mxu0 0
          %1230 = vmatpush2.bf16.msra.mxu0 0
          %1231 = vmatprep.subr.bf16.mxu0 0
          %1232 = vmatpush2.bf16.msra.mxu0 0
          %1233 = vmatprep.subr.bf16.mxu0 0
          %1234 = vmatpush2.bf16.msra.mxu0 0
          %1235 = vmatprep.subr.bf16.mxu0 0
          %1236 = vmatpush2.bf16.msra.mxu0 0
          %1237 = vmatprep.subr.bf16.mxu0 0
          %1238 = vmatpush2.bf16.msra.mxu0 0
          %1239 = vmatprep.subr.bf16.mxu0 0
          %1240 = vmatpush2.bf16.msra.mxu0 0
          %1241 = vmatprep.subr.bf16.mxu0 0
          %1242 = vmatpush2.bf16.msra.mxu0 0
          %1243 = vmatprep.mubr.bf16.mxu0 0
          %1244 = vmatmul.mubr.bf16.gmra.mxu0 %v1209
          %v1245 = vpop.f32.mrf.mxu0
          %v1246 = vadd.f32 %v1174, %v1245
          %v1247 = vpop.f32.mrf.mxu0
          %v1248 = vpop.f32.mrf.mxu0
          %v1249 = vpop.f32.mrf.mxu0
          %1250 = vdwg.mxu0
          %v1251 = vadd.f32 %v1193, %v1246
          %v1252 = vxor.u32 %v1251, 2147483648
          %v1253 = vmul.f32 %v1252, 1.442695
          %v1254 = vpow.pop %v1253
          %v1255 = vadd.f32 %v1254, 1.0
          %v1256 = vrcp.pop %v1255
          %v1257 = vmul.f32 1.0, %v1256
          %1259 = vrot.lane.b32.xlu0 %v1246, 64
          %v1260 = vpop.permute.xlu0 %1259
          %v1262 = vmul.f32 %v1257, %v1260
          %1264 = vrot.lane.b32.xlu0 %v1262, 64
          %v1265 = vpop.permute.xlu0 %1264
          %v1267 = vadd.f32 %v1193, %v1265
          %v1268 = vtanh.pop %v1267
          %v1269 = vsub.f32 1.0, %v1257
          %1271 = vrot.lane.b32.xlu0 %v1268, 96
          %v1272 = vpop.permute.xlu0 %1271
          %v1274 = vmul.f32 %v1269, %v1272
          %1276 = vrot.lane.b32.xlu0 %v1190, 32
          %v1277 = vpop.permute.xlu0 %1276
          %v1279 = vmul.f32 %v1257, %v1277
          %v1280 = vadd.f32 %v1274, %v1279
          %1282 = vrot.lane.b32.xlu0 %v1280, 96
          %v1283 = vpop.permute.xlu0 %1282
          %s1285 = scalar_lea.vmem [#allocation3], %s1191
          %1286 = vst.msk [vmem:[%s1285] sm:$0xff] %vm1207, %v1283
          %s1287 = smul.u32 %s1185, 2
          %s1288 = sadd.s32 %s1287, 1
          %s1289 = smul.u32 %s1288, 8
          %s1290 = scalar_lea.vmem [#allocation2], %s1289
          %v1291 = vld [vmem:[%s1290] sm:$0xff]
          %v1292 = vpack.c.bf16 %v1280, %v1280
          %1294 = vrot.lane.b32.xlu0 %v1292, 96
          %v1295 = vpop.permute.xlu0 %1294
          %v1297 = vsel %vm1207, %v1295, 0
          %1299 = vmatprep.subr.bf16.mxu0 0
          %1300 = vmatpush1.bf16.msra.mxu0 0
          %1301 = vmatprep.subr.bf16.mxu0 0
          %1302 = vmatpush1.bf16.msra.mxu0 0
          %1303 = vmatprep.subr.bf16.mxu0 0
          %1304 = vmatpush1.bf16.msra.mxu0 0
          %1305 = vmatprep.subr.bf16.mxu0 0
          %1306 = vmatpush1.bf16.msra.mxu0 0
          %1307 = vmatprep.subr.bf16.mxu0 0
          %1308 = vmatpush1.bf16.msra.mxu0 0
          %1309 = vmatprep.subr.bf16.mxu0 0
          %1310 = vmatpush1.bf16.msra.mxu0 0
          %1311 = vmatprep.subr.bf16.mxu0 0
          %1312 = vmatpush1.bf16.msra.mxu0 %v1204
          %1313 = vmatprep.subr.bf16.mxu0 0
          %1314 = vmatpush1.bf16.msra.mxu0 %v1203
          %1315 = vmatprep.subr.bf16.mxu0 0
          %1316 = vmatpush2.bf16.msra.mxu0 0
          %1317 = vmatprep.subr.bf16.mxu0 0
          %1318 = vmatpush2.bf16.msra.mxu0 0
          %1319 = vmatprep.subr.bf16.mxu0 0
          %1320 = vmatpush2.bf16.msra.mxu0 0
          %1321 = vmatprep.subr.bf16.mxu0 0
          %1322 = vmatpush2.bf16.msra.mxu0 0
          %1323 = vmatprep.subr.bf16.mxu0 0
          %1324 = vmatpush2.bf16.msra.mxu0 0
          %1325 = vmatprep.subr.bf16.mxu0 0
          %1326 = vmatpush2.bf16.msra.mxu0 0
          %1327 = vmatprep.subr.bf16.mxu0 0
          %1328 = vmatpush2.bf16.msra.mxu0 0
          %1329 = vmatprep.subr.bf16.mxu0 0
          %1330 = vmatpush2.bf16.msra.mxu0 0
          %1331 = vmatprep.mubr.bf16.mxu0 0
          %1332 = vmatmul.mubr.bf16.gmra.mxu0 %v1297
          %v1333 = vpop.f32.mrf.mxu0
          %v1334 = vadd.f32 %v1174, %v1333
          %v1335 = vpop.f32.mrf.mxu0
          %v1336 = vpop.f32.mrf.mxu0
          %v1337 = vpop.f32.mrf.mxu0
          %1338 = vdwg.mxu0
          %v1339 = vadd.f32 %v1291, %v1334
          %v1340 = vxor.u32 %v1339, 2147483648
          %v1341 = vmul.f32 %v1340, 1.442695
          %v1342 = vpow.pop %v1341
          %v1343 = vadd.f32 %v1342, 1.0
          %v1344 = vrcp.pop %v1343
          %v1345 = vmul.f32 1.0, %v1344
          %1347 = vrot.lane.b32.xlu0 %v1334, 64
          %v1348 = vpop.permute.xlu0 %1347
          %v1350 = vmul.f32 %v1345, %v1348
          %1352 = vrot.lane.b32.xlu0 %v1350, 64
          %v1353 = vpop.permute.xlu0 %1352
          %v1355 = vadd.f32 %v1291, %v1353
          %v1356 = vtanh.pop %v1355
          %v1357 = vsub.f32 1.0, %v1345
          %1359 = vrot.lane.b32.xlu0 %v1356, 96
          %v1360 = vpop.permute.xlu0 %1359
          %v1362 = vmul.f32 %v1357, %v1360
          %v1363 = vmul.f32 %v1345, %v1280
          %v1364 = vadd.f32 %v1362, %v1363
          %1366 = vrot.lane.b32.xlu0 %v1364, 96
          %v1367 = vpop.permute.xlu0 %1366
          %s1369 = scalar_lea.vmem [#allocation3], %s1289
          %1370 = vst.msk [vmem:[%s1369] sm:$0xff] %vm1207, %v1367
        $region125: #{tpu_custom_call.1} parent=91 // loop_footer
          %s1189 = sadd.s32 1, %s1185
        $region126: #{tpu_custom_call.1} parent=91 // loop_footer_branch
          %1184 = sbr.rel target = $region122
        $region127: #{tpu_custom_call.1} parent=91 // loop_exit
          _
        %v1371 = vld [vmem:[#allocation3] sm:$0xff]
        %v1372 = vld [vmem:[#allocation3 + $0x8] sm:$0xff]
        %v1373 = vld [vmem:[#allocation3 + $0x10] sm:$0xff]
        %v1374 = vld [vmem:[#allocation3 + $0x18] sm:$0xff]
        %v1375 = vld [vmem:[#allocation3 + $0x20] sm:$0xff]
        %v1376 = vld [vmem:[#allocation3 + $0x28] sm:$0xff]
        %v1377 = vld [vmem:[#allocation3 + $0x30] sm:$0xff]
        %v1378 = vld [vmem:[#allocation3 + $0x38] sm:$0xff]
        %v1379 = vpack.c.bf16 %v1372, %v1371
        %v1380 = vpack.c.bf16 %v1374, %v1373
        %v1381 = vpack.c.bf16 %v1376, %v1375
        %v1382 = vpack.c.bf16 %v1378, %v1377
        %v1383 = vld [vmem:[%s794] sm:$0xf]
        %v1384 = vld [vmem:[%s794 + $0x4] sm:$0xf]
        %v1385 = vld [vmem:[%s794 + $0x8] sm:$0xf]
        %v1386 = vld [vmem:[%s794 + $0xc] sm:$0xf]
        %v1387 = vld [vmem:[%s987] sm:$0x1]
        %v1389 = vlaneseq
        %v1390 = vshrl.u32 %v1389, 7
        %v1391 = vsub.s32 0, %v1390
        %v1392 = vrot.slane %v1387, %v1391
        %v1398 = vunpack.c.l.b16 %v1383
        %v1399 = vunpack.c.l.b16 %v1384
        %v1400 = vunpack.c.l.b16 %v1385
        %v1401 = vunpack.c.l.b16 %v1386
        %v1402 = vpack.c.b16 %v1399, %v1398
        %v1403 = vpack.c.b16 %v1401, %v1400
        %vm1406 = vcmask 261120
        %v1408 = vsel %vm1406, %v1379, 0
        %v1411 = vsel %vm1406, %v1380, 0
        %v1414 = vsel %vm1406, %v1381, 0
        %v1417 = vsel %vm1406, %v1382, 0
        %1419 = vmatprep.subr.bf16.mxu0 0
        %1420 = vmatpush1.bf16.msra.mxu0 0
        %1421 = vmatprep.subr.bf16.mxu0 0
        %1422 = vmatpush1.bf16.msra.mxu0 0
        %1423 = vmatprep.subr.bf16.mxu0 0
        %1424 = vmatpush1.bf16.msra.mxu0 0
        %1425 = vmatprep.subr.bf16.mxu0 0
        %1426 = vmatpush1.bf16.msra.mxu0 0
        %1427 = vmatprep.subr.bf16.mxu0 0
        %1428 = vmatpush1.bf16.msra.mxu0 0
        %1429 = vmatprep.subr.bf16.mxu0 0
        %1430 = vmatpush1.bf16.msra.mxu0 0
        %1431 = vmatprep.subr.bf16.mxu0 0
        %1432 = vmatpush1.bf16.msra.mxu0 %v1403
        %1433 = vmatprep.subr.bf16.mxu0 0
        %1434 = vmatpush1.bf16.msra.mxu0 %v1402
        %1435 = vmatprep.subr.bf16.mxu0 0
        %1436 = vmatpush2.bf16.msra.mxu0 0
        %1437 = vmatprep.subr.bf16.mxu0 0
        %1438 = vmatpush2.bf16.msra.mxu0 0
        %1439 = vmatprep.subr.bf16.mxu0 0
        %1440 = vmatpush2.bf16.msra.mxu0 0
        %1441 = vmatprep.subr.bf16.mxu0 0
        %1442 = vmatpush2.bf16.msra.mxu0 0
        %1443 = vmatprep.subr.bf16.mxu0 0
        %1444 = vmatpush2.bf16.msra.mxu0 0
        %1445 = vmatprep.subr.bf16.mxu0 0
        %1446 = vmatpush2.bf16.msra.mxu0 0
        %1447 = vmatprep.subr.bf16.mxu0 0
        %1448 = vmatpush2.bf16.msra.mxu0 0
        %1449 = vmatprep.subr.bf16.mxu0 0
        %1450 = vmatpush2.bf16.msra.mxu0 0
        %1451 = vmatprep.mubr.bf16.mxu0 0
        %1452 = vmatmul.mubr.bf16.gmra.mxu0 %v1408
        %v1453 = vpop.f32.mrf.mxu0
        %v1454 = vadd.f32 %v1392, %v1453
        %v1455 = vpop.f32.mrf.mxu0
        %v1456 = vpop.f32.mrf.mxu0
        %v1457 = vadd.f32 %v1392, %v1456
        %v1458 = vpop.f32.mrf.mxu0
        %1459 = vmatprep.mubr.bf16.mxu0 0
        %1460 = vmatmul.mubr.bf16.gmra.mxu0 %v1411
        %v1461 = vpop.f32.mrf.mxu0
        %v1462 = vadd.f32 %v1392, %v1461
        %v1463 = vpop.f32.mrf.mxu0
        %v1464 = vpop.f32.mrf.mxu0
        %v1465 = vadd.f32 %v1392, %v1464
        %v1466 = vpop.f32.mrf.mxu0
        %1467 = vmatprep.mubr.bf16.mxu0 0
        %1468 = vmatmul.mubr.bf16.gmra.mxu0 %v1414
        %v1469 = vpop.f32.mrf.mxu0
        %v1470 = vadd.f32 %v1392, %v1469
        %v1471 = vpop.f32.mrf.mxu0
        %v1472 = vpop.f32.mrf.mxu0
        %v1473 = vadd.f32 %v1392, %v1472
        %v1474 = vpop.f32.mrf.mxu0
        %1475 = vmatprep.mubr.bf16.mxu0 0
        %1476 = vmatmul.mubr.bf16.gmra.mxu0 %v1417
        %v1477 = vpop.f32.mrf.mxu0
        %v1478 = vadd.f32 %v1392, %v1477
        %v1479 = vpop.f32.mrf.mxu0
        %v1480 = vpop.f32.mrf.mxu0
        %v1481 = vadd.f32 %v1392, %v1480
        %v1482 = vpop.f32.mrf.mxu0
        %1483 = vdwg.mxu0
        %1484 = vst.msk [vmem:[#allocation2] sm:$0xff] %vm1152, %v1454
        %1485 = vst.msk [vmem:[#allocation2 + $0x8] sm:$0xff] %vm1152, %v1457
        %1486 = vst.msk [vmem:[#allocation2 + $0x10] sm:$0xff] %vm1152, %v1462
        %1487 = vst.msk [vmem:[#allocation2 + $0x18] sm:$0xff] %vm1152, %v1465
        %1488 = vst.msk [vmem:[#allocation2 + $0x20] sm:$0xff] %vm1152, %v1470
        %1489 = vst.msk [vmem:[#allocation2 + $0x28] sm:$0xff] %vm1152, %v1473
        %1490 = vst.msk [vmem:[#allocation2 + $0x30] sm:$0xff] %vm1152, %v1478
        %1491 = vst.msk [vmem:[#allocation2 + $0x38] sm:$0xff] %vm1152, %v1481
        %s1492 = scalar_lea.vmem %s973, 8
        %v1493 = vld [vmem:[%s1492] sm:$0xff]
        loop: start=0, step=1, limit=4
        $region128: #{tpu_custom_call.1} parent=91 // loop_pre_header
          _
        $region129: #{tpu_custom_call.1} parent=91 // loop_header
          %s1495 = sphi 0, %s1499
          %p1496 = scmp.ge.s32.totalorder %s1495, 4
          %v1500 = vphi %v1493, %v1818
          %v1501 = vphi 0.0, %v1814
          %v1502 = vphi 0.0, %v1815
        $region130: #{tpu_custom_call.1} parent=91 // loop_header_branch
          %1498 = sbr.rel (%p1496) target = $region134
        $region131: #{tpu_custom_call.1} parent=91 // loop_body
          %s1503 = smul.u32 %s1495, 2
          %s1504 = smul.u32 %s1495, 16
          %s1505 = scalar_lea.vmem [#allocation2], %s1504
          %v1506 = vld [vmem:[%s1505] sm:$0xff]
          %v1507 = vpack.c.bf16 %v1500, %v1500
          %v1512 = vunpack.c.l.b16 %v1165
          %v1513 = vunpack.c.l.b16 %v1166
          %v1514 = vunpack.c.l.b16 %v1167
          %v1515 = vunpack.c.l.b16 %v1168
          %v1516 = vpack.c.b16 %v1513, %v1512
          %v1517 = vpack.c.b16 %v1515, %v1514
          %v1521 = vsel %vm1406, %v1507, 0
          %1523 = vmatprep.subr.bf16.mxu0 0
          %1524 = vmatpush1.bf16.msra.mxu0 0
          %1525 = vmatprep.subr.bf16.mxu0 0
          %1526 = vmatpush1.bf16.msra.mxu0 0
          %1527 = vmatprep.subr.bf16.mxu0 0
          %1528 = vmatpush1.bf16.msra.mxu0 0
          %1529 = vmatprep.subr.bf16.mxu0 0
          %1530 = vmatpush1.bf16.msra.mxu0 0
          %1531 = vmatprep.subr.bf16.mxu0 0
          %1532 = vmatpush1.bf16.msra.mxu0 0
          %1533 = vmatprep.subr.bf16.mxu0 0
          %1534 = vmatpush1.bf16.msra.mxu0 0
          %1535 = vmatprep.subr.bf16.mxu0 0
          %1536 = vmatpush1.bf16.msra.mxu0 %v1517
          %1537 = vmatprep.subr.bf16.mxu0 0
          %1538 = vmatpush1.bf16.msra.mxu0 %v1516
          %1539 = vmatprep.subr.bf16.mxu0 0
          %1540 = vmatpush2.bf16.msra.mxu0 0
          %1541 = vmatprep.subr.bf16.mxu0 0
          %1542 = vmatpush2.bf16.msra.mxu0 0
          %1543 = vmatprep.subr.bf16.mxu0 0
          %1544 = vmatpush2.bf16.msra.mxu0 0
          %1545 = vmatprep.subr.bf16.mxu0 0
          %1546 = vmatpush2.bf16.msra.mxu0 0
          %1547 = vmatprep.subr.bf16.mxu0 0
          %1548 = vmatpush2.bf16.msra.mxu0 0
          %1549 = vmatprep.subr.bf16.mxu0 0
          %1550 = vmatpush2.bf16.msra.mxu0 0
          %1551 = vmatprep.subr.bf16.mxu0 0
          %1552 = vmatpush2.bf16.msra.mxu0 0
          %1553 = vmatprep.subr.bf16.mxu0 0
          %1554 = vmatpush2.bf16.msra.mxu0 0
          %1555 = vmatprep.mubr.bf16.mxu0 0
          %1556 = vmatmul.mubr.bf16.gmra.mxu0 %v1521
          %v1557 = vpop.f32.mrf.mxu0
          %v1558 = vadd.f32 %v1181, %v1557
          %v1559 = vpop.f32.mrf.mxu0
          %v1560 = vpop.f32.mrf.mxu0
          %v1561 = vpop.f32.mrf.mxu0
          %1562 = vdwg.mxu0
          %v1563 = vadd.f32 %v1506, %v1558
          %v1564 = vxor.u32 %v1563, 2147483648
          %v1565 = vmul.f32 %v1564, 1.442695
          %v1566 = vpow.pop %v1565
          %v1567 = vadd.f32 %v1566, 1.0
          %v1568 = vrcp.pop %v1567
          %v1569 = vmul.f32 1.0, %v1568
          %1571 = vrot.lane.b32.xlu0 %v1558, 64
          %v1572 = vpop.permute.xlu0 %1571
          %v1574 = vmul.f32 %v1569, %v1572
          %1576 = vrot.lane.b32.xlu0 %v1574, 64
          %v1577 = vpop.permute.xlu0 %1576
          %v1579 = vadd.f32 %v1506, %v1577
          %v1580 = vtanh.pop %v1579
          %v1581 = vsub.f32 1.0, %v1569
          %1583 = vrot.lane.b32.xlu0 %v1580, 96
          %v1584 = vpop.permute.xlu0 %1583
          %v1586 = vmul.f32 %v1581, %v1584
          %1588 = vrot.lane.b32.xlu0 %v1500, 32
          %v1589 = vpop.permute.xlu0 %1588
          %v1591 = vmul.f32 %v1569, %v1589
          %v1592 = vadd.f32 %v1586, %v1591
          %v1593 = vpack.c.bf16 %v1592, %v1592
          %s1594 = smul.u32 %s1503, 8
          %s1595 = smul.addr %s1594, 4
          %s1596 = scalar_lea.vmem %s812, %s1595 [#allocation10]
          %v1597 = vld [vmem:[%s1596] sm:$0xff]
          %v1598 = vld [vmem:[%s1596 + $0x8] sm:$0xff]
          %v1599 = vld [vmem:[%s1596 + $0x10] sm:$0xff]
          %v1600 = vld [vmem:[%s1596 + $0x18] sm:$0xff]
          %1602 = vrot.lane.b32.xlu0 %v1593, 96
          %v1603 = vpop.permute.xlu0 %1602
          %v1608 = vunpack.c.l.b16 %v1597
          %v1609 = vunpack.c.h.b16 %v1597
          %v1610 = vunpack.c.l.b16 %v1598
          %v1611 = vunpack.c.h.b16 %v1598
          %v1612 = vunpack.c.l.b16 %v1599
          %v1613 = vunpack.c.h.b16 %v1599
          %v1614 = vunpack.c.l.b16 %v1600
          %v1615 = vunpack.c.h.b16 %v1600
          %v1616 = vpack.c.b16 %v1610, %v1608
          %v1617 = vpack.c.b16 %v1611, %v1609
          %v1618 = vpack.c.b16 %v1614, %v1612
          %v1619 = vpack.c.b16 %v1615, %v1613
          %v1625 = vsel %vm1406, %v1603, 0
          %1627 = vmatprep.subr.bf16.mxu0 0
          %1628 = vmatpush1.bf16.msra.mxu0 0
          %1629 = vmatprep.subr.bf16.mxu0 0
          %1630 = vmatpush1.bf16.msra.mxu0 0
          %1631 = vmatprep.subr.bf16.mxu0 0
          %1632 = vmatpush1.bf16.msra.mxu0 0
          %1633 = vmatprep.subr.bf16.mxu0 0
          %1634 = vmatpush1.bf16.msra.mxu0 0
          %1635 = vmatprep.subr.bf16.mxu0 0
          %1636 = vmatpush1.bf16.msra.mxu0 0
          %1637 = vmatprep.subr.bf16.mxu0 0
          %1638 = vmatpush1.bf16.msra.mxu0 0
          %1639 = vmatprep.subr.bf16.mxu0 %v1619
          %1640 = vmatpush1.bf16.msra.mxu0 %v1618
          %1641 = vmatprep.subr.bf16.mxu0 %v1617
          %1642 = vmatpush1.bf16.msra.mxu0 %v1616
          %1643 = vmatprep.subr.bf16.mxu0 0
          %1644 = vmatpush2.bf16.msra.mxu0 0
          %1645 = vmatprep.subr.bf16.mxu0 0
          %1646 = vmatpush2.bf16.msra.mxu0 0
          %1647 = vmatprep.subr.bf16.mxu0 0
          %1648 = vmatpush2.bf16.msra.mxu0 0
          %1649 = vmatprep.subr.bf16.mxu0 0
          %1650 = vmatpush2.bf16.msra.mxu0 0
          %1651 = vmatprep.subr.bf16.mxu0 0
          %1652 = vmatpush2.bf16.msra.mxu0 0
          %1653 = vmatprep.subr.bf16.mxu0 0
          %1654 = vmatpush2.bf16.msra.mxu0 0
          %1655 = vmatprep.subr.bf16.mxu0 0
          %1656 = vmatpush2.bf16.msra.mxu0 0
          %1657 = vmatprep.subr.bf16.mxu0 0
          %1658 = vmatpush2.bf16.msra.mxu0 0
          %1659 = vmatprep.mubr.bf16.mxu0 0
          %1660 = vmatmul.mubr.bf16.gmra.mxu0 %v1625
          %v1661 = vpop.f32.mrf.mxu0
          %v1662 = vadd.f32 0.0, %v1661
          %v1663 = vpop.f32.mrf.mxu0
          %v1664 = vadd.f32 0.0, %v1663
          %v1665 = vpop.f32.mrf.mxu0
          %v1666 = vpop.f32.mrf.mxu0
          %1667 = vdwg.mxu0
          %v1668 = vadd.f32 %v1501, %v1662
          %v1669 = vadd.f32 %v1502, %v1664
          %s1670 = sadd.s32 %s1503, 1
          %s1671 = smul.u32 %s1670, 8
          %s1672 = scalar_lea.vmem [#allocation2], %s1671
          %v1673 = vld [vmem:[%s1672] sm:$0xff]
          %1674 = vmatprep.subr.bf16.mxu0 0
          %1675 = vmatpush1.bf16.msra.mxu0 0
          %1676 = vmatprep.subr.bf16.mxu0 0
          %1677 = vmatpush1.bf16.msra.mxu0 0
          %1678 = vmatprep.subr.bf16.mxu0 0
          %1679 = vmatpush1.bf16.msra.mxu0 0
          %1680 = vmatprep.subr.bf16.mxu0 0
          %1681 = vmatpush1.bf16.msra.mxu0 0
          %1682 = vmatprep.subr.bf16.mxu0 0
          %1683 = vmatpush1.bf16.msra.mxu0 0
          %1684 = vmatprep.subr.bf16.mxu0 0
          %1685 = vmatpush1.bf16.msra.mxu0 0
          %1686 = vmatprep.subr.bf16.mxu0 0
          %1687 = vmatpush1.bf16.msra.mxu0 %v1517
          %1688 = vmatprep.subr.bf16.mxu0 0
          %1689 = vmatpush1.bf16.msra.mxu0 %v1516
          %1690 = vmatprep.subr.bf16.mxu0 0
          %1691 = vmatpush2.bf16.msra.mxu0 0
          %1692 = vmatprep.subr.bf16.mxu0 0
          %1693 = vmatpush2.bf16.msra.mxu0 0
          %1694 = vmatprep.subr.bf16.mxu0 0
          %1695 = vmatpush2.bf16.msra.mxu0 0
          %1696 = vmatprep.subr.bf16.mxu0 0
          %1697 = vmatpush2.bf16.msra.mxu0 0
          %1698 = vmatprep.subr.bf16.mxu0 0
          %1699 = vmatpush2.bf16.msra.mxu0 0
          %1700 = vmatprep.subr.bf16.mxu0 0
          %1701 = vmatpush2.bf16.msra.mxu0 0
          %1702 = vmatprep.subr.bf16.mxu0 0
          %1703 = vmatpush2.bf16.msra.mxu0 0
          %1704 = vmatprep.subr.bf16.mxu0 0
          %1705 = vmatpush2.bf16.msra.mxu0 0
          %1706 = vmatprep.mubr.bf16.mxu0 0
          %1707 = vmatmul.mubr.bf16.gmra.mxu0 %v1625
          %v1708 = vpop.f32.mrf.mxu0
          %v1709 = vadd.f32 %v1181, %v1708
          %v1710 = vpop.f32.mrf.mxu0
          %v1711 = vpop.f32.mrf.mxu0
          %v1712 = vpop.f32.mrf.mxu0
          %1713 = vdwg.mxu0
          %v1714 = vadd.f32 %v1673, %v1709
          %v1715 = vxor.u32 %v1714, 2147483648
          %v1716 = vmul.f32 %v1715, 1.442695
          %v1717 = vpow.pop %v1716
          %v1718 = vadd.f32 %v1717, 1.0
          %v1719 = vrcp.pop %v1718
          %v1720 = vmul.f32 1.0, %v1719
          %1722 = vrot.lane.b32.xlu0 %v1709, 64
          %v1723 = vpop.permute.xlu0 %1722
          %v1725 = vmul.f32 %v1720, %v1723
          %1727 = vrot.lane.b32.xlu0 %v1725, 64
          %v1728 = vpop.permute.xlu0 %1727
          %v1730 = vadd.f32 %v1673, %v1728
          %v1731 = vtanh.pop %v1730
          %v1732 = vsub.f32 1.0, %v1720
          %1734 = vrot.lane.b32.xlu0 %v1731, 96
          %v1735 = vpop.permute.xlu0 %1734
          %v1737 = vmul.f32 %v1732, %v1735
          %v1738 = vmul.f32 %v1720, %v1592
          %v1739 = vadd.f32 %v1737, %v1738
          %v1740 = vpack.c.bf16 %v1739, %v1739
          %s1741 = smul.addr %s1671, 4
          %s1742 = scalar_lea.vmem %s812, %s1741 [#allocation10]
          %v1743 = vld [vmem:[%s1742] sm:$0xff]
          %v1744 = vld [vmem:[%s1742 + $0x8] sm:$0xff]
          %v1745 = vld [vmem:[%s1742 + $0x10] sm:$0xff]
          %v1746 = vld [vmem:[%s1742 + $0x18] sm:$0xff]
          %1748 = vrot.lane.b32.xlu0 %v1740, 96
          %v1749 = vpop.permute.xlu0 %1748
          %v1754 = vunpack.c.l.b16 %v1743
          %v1755 = vunpack.c.h.b16 %v1743
          %v1756 = vunpack.c.l.b16 %v1744
          %v1757 = vunpack.c.h.b16 %v1744
          %v1758 = vunpack.c.l.b16 %v1745
          %v1759 = vunpack.c.h.b16 %v1745
          %v1760 = vunpack.c.l.b16 %v1746
          %v1761 = vunpack.c.h.b16 %v1746
          %v1762 = vpack.c.b16 %v1756, %v1754
          %v1763 = vpack.c.b16 %v1757, %v1755
          %v1764 = vpack.c.b16 %v1760, %v1758
          %v1765 = vpack.c.b16 %v1761, %v1759
          %v1771 = vsel %vm1406, %v1749, 0
          %1773 = vmatprep.subr.bf16.mxu0 0
          %1774 = vmatpush1.bf16.msra.mxu0 0
          %1775 = vmatprep.subr.bf16.mxu0 0
          %1776 = vmatpush1.bf16.msra.mxu0 0
          %1777 = vmatprep.subr.bf16.mxu0 0
          %1778 = vmatpush1.bf16.msra.mxu0 0
          %1779 = vmatprep.subr.bf16.mxu0 0
          %1780 = vmatpush1.bf16.msra.mxu0 0
          %1781 = vmatprep.subr.bf16.mxu0 0
          %1782 = vmatpush1.bf16.msra.mxu0 0
          %1783 = vmatprep.subr.bf16.mxu0 0
          %1784 = vmatpush1.bf16.msra.mxu0 0
          %1785 = vmatprep.subr.bf16.mxu0 %v1765
          %1786 = vmatpush1.bf16.msra.mxu0 %v1764
          %1787 = vmatprep.subr.bf16.mxu0 %v1763
          %1788 = vmatpush1.bf16.msra.mxu0 %v1762
          %1789 = vmatprep.subr.bf16.mxu0 0
          %1790 = vmatpush2.bf16.msra.mxu0 0
          %1791 = vmatprep.subr.bf16.mxu0 0
          %1792 = vmatpush2.bf16.msra.mxu0 0
          %1793 = vmatprep.subr.bf16.mxu0 0
          %1794 = vmatpush2.bf16.msra.mxu0 0
          %1795 = vmatprep.subr.bf16.mxu0 0
          %1796 = vmatpush2.bf16.msra.mxu0 0
          %1797 = vmatprep.subr.bf16.mxu0 0
          %1798 = vmatpush2.bf16.msra.mxu0 0
          %1799 = vmatprep.subr.bf16.mxu0 0
          %1800 = vmatpush2.bf16.msra.mxu0 0
          %1801 = vmatprep.subr.bf16.mxu0 0
          %1802 = vmatpush2.bf16.msra.mxu0 0
          %1803 = vmatprep.subr.bf16.mxu0 0
          %1804 = vmatpush2.bf16.msra.mxu0 0
          %1805 = vmatprep.mubr.bf16.mxu0 0
          %1806 = vmatmul.mubr.bf16.gmra.mxu0 %v1771
          %v1807 = vpop.f32.mrf.mxu0
          %v1808 = vadd.f32 0.0, %v1807
          %v1809 = vpop.f32.mrf.mxu0
          %v1810 = vadd.f32 0.0, %v1809
          %v1811 = vpop.f32.mrf.mxu0
          %v1812 = vpop.f32.mrf.mxu0
          %1813 = vdwg.mxu0
          %v1814 = vadd.f32 %v1668, %v1808
          %v1815 = vadd.f32 %v1669, %v1810
          %1817 = vrot.lane.b32.xlu0 %v1739, 96
          %v1818 = vpop.permute.xlu0 %1817
        $region132: #{tpu_custom_call.1} parent=91 // loop_footer
          %s1499 = sadd.s32 1, %s1495
        $region133: #{tpu_custom_call.1} parent=91 // loop_footer_branch
          %1494 = sbr.rel target = $region129
        $region134: #{tpu_custom_call.1} parent=91 // loop_exit
          _
        %v1820 = vld [vmem:[%s994] sm:$0x3]
        %v1822 = vlaneseq
        %v1823 = vshrl.u32 %v1822, 7
        %v1824 = vsub.s32 0, %v1823
        %v1825 = vrot.slane %v1820, %v1824
        %v1826 = vlaneseq
        %v1827 = vshrl.u32 %v1826, 7
        %v1828 = vsub.s32 1, %v1827
        %v1829 = vrot.slane %v1820, %v1828
        %v1832 = vadd.f32 %v1501, %v1825
        %v1833 = vadd.f32 %v1502, %v1829
        %v1834 = vpack.c.bf16 %v1832, %v1832
        %v1835 = vpack.c.bf16 %v1833, %v1833
        %v1836 = vld [vmem:[%s821] sm:$0xf]
        %v1837 = vld [vmem:[%s821 + $0x4] sm:$0xf]
        %v1838 = vld [vmem:[%s821 + $0x8] sm:$0xf]
        %v1839 = vld [vmem:[%s821 + $0xc] sm:$0xf]
        %v1840 = vld [vmem:[%s821 + $0x10] sm:$0xf]
        %v1841 = vld [vmem:[%s821 + $0x14] sm:$0xf]
        %v1842 = vld [vmem:[%s821 + $0x18] sm:$0xf]
        %v1843 = vld [vmem:[%s821 + $0x1c] sm:$0xf]
        %v1844 = vld [vmem:[%s821 + $0x20] sm:$0xf]
        %v1845 = vld [vmem:[%s821 + $0x24] sm:$0xf]
        %v1846 = vld [vmem:[%s821 + $0x28] sm:$0xf]
        %v1847 = vld [vmem:[%s821 + $0x2c] sm:$0xf]
        %v1848 = vld [vmem:[%s821 + $0x30] sm:$0xf]
        %v1849 = vld [vmem:[%s821 + $0x34] sm:$0xf]
        %v1850 = vld [vmem:[%s821 + $0x38] sm:$0xf]
        %v1851 = vld [vmem:[%s821 + $0x3c] sm:$0xf]
        %v1852 = vld [vmem:[%s821 + $0x40] sm:$0xf]
        %v1853 = vld [vmem:[%s821 + $0x44] sm:$0xf]
        %v1854 = vld [vmem:[%s821 + $0x48] sm:$0xf]
        %v1855 = vld [vmem:[%s821 + $0x4c] sm:$0xf]
        %v1856 = vld [vmem:[%s821 + $0x50] sm:$0xf]
        %v1857 = vld [vmem:[%s821 + $0x54] sm:$0xf]
        %v1858 = vld [vmem:[%s821 + $0x58] sm:$0xf]
        %v1859 = vld [vmem:[%s821 + $0x5c] sm:$0xf]
        %v1860 = vpack.c.bf16 %v1500, %v1500
        %v1861 = vld [vmem:[%s830] sm:$0xf]
        %v1862 = vld [vmem:[%s830 + $0x4] sm:$0xf]
        %v1863 = vld [vmem:[%s830 + $0x8] sm:$0xf]
        %v1864 = vld [vmem:[%s830 + $0xc] sm:$0xf]
        %v1869 = vunpack.c.l.b16 %v1861
        %v1870 = vunpack.c.l.b16 %v1862
        %v1871 = vunpack.c.l.b16 %v1863
        %v1872 = vunpack.c.l.b16 %v1864
        %v1873 = vpack.c.b16 %v1870, %v1869
        %v1874 = vpack.c.b16 %v1872, %v1871
        %v1878 = vsel %vm1406, %v1860, 0
        %1880 = vmatprep.subr.bf16.mxu0 0
        %1881 = vmatpush1.bf16.msra.mxu0 0
        %1882 = vmatprep.subr.bf16.mxu0 0
        %1883 = vmatpush1.bf16.msra.mxu0 0
        %1884 = vmatprep.subr.bf16.mxu0 0
        %1885 = vmatpush1.bf16.msra.mxu0 0
        %1886 = vmatprep.subr.bf16.mxu0 0
        %1887 = vmatpush1.bf16.msra.mxu0 0
        %1888 = vmatprep.subr.bf16.mxu0 0
        %1889 = vmatpush1.bf16.msra.mxu0 0
        %1890 = vmatprep.subr.bf16.mxu0 0
        %1891 = vmatpush1.bf16.msra.mxu0 0
        %1892 = vmatprep.subr.bf16.mxu0 0
        %1893 = vmatpush1.bf16.msra.mxu0 %v1874
        %1894 = vmatprep.subr.bf16.mxu0 0
        %1895 = vmatpush1.bf16.msra.mxu0 %v1873
        %1896 = vmatprep.subr.bf16.mxu0 0
        %1897 = vmatpush2.bf16.msra.mxu0 0
        %1898 = vmatprep.subr.bf16.mxu0 0
        %1899 = vmatpush2.bf16.msra.mxu0 0
        %1900 = vmatprep.subr.bf16.mxu0 0
        %1901 = vmatpush2.bf16.msra.mxu0 0
        %1902 = vmatprep.subr.bf16.mxu0 0
        %1903 = vmatpush2.bf16.msra.mxu0 0
        %1904 = vmatprep.subr.bf16.mxu0 0
        %1905 = vmatpush2.bf16.msra.mxu0 0
        %1906 = vmatprep.subr.bf16.mxu0 0
        %1907 = vmatpush2.bf16.msra.mxu0 0
        %1908 = vmatprep.subr.bf16.mxu0 0
        %1909 = vmatpush2.bf16.msra.mxu0 0
        %1910 = vmatprep.subr.bf16.mxu0 0
        %1911 = vmatpush2.bf16.msra.mxu0 0
        %1912 = vmatprep.mubr.bf16.mxu0 0
        %1913 = vmatmul.mubr.bf16.gmra.mxu0 %v1878
        %v1914 = vpop.f32.mrf.mxu0
        %v1915 = vadd.f32 0.0, %v1914
        %v1916 = vpop.f32.mrf.mxu0
        %v1917 = vpop.f32.mrf.mxu0
        %v1918 = vpop.f32.mrf.mxu0
        %1919 = vdwg.mxu0
        %v1944 = vunpack.c.l.b16 %v1836
        %v1945 = vunpack.c.l.b16 %v1837
        %v1946 = vunpack.c.l.b16 %v1838
        %v1947 = vunpack.c.l.b16 %v1839
        %v1948 = vunpack.c.l.b16 %v1840
        %v1949 = vunpack.c.l.b16 %v1841
        %v1950 = vunpack.c.l.b16 %v1842
        %v1951 = vunpack.c.l.b16 %v1843
        %v1952 = vunpack.c.l.b16 %v1844
        %v1953 = vunpack.c.l.b16 %v1845
        %v1954 = vunpack.c.l.b16 %v1846
        %v1955 = vunpack.c.l.b16 %v1847
        %v1956 = vunpack.c.l.b16 %v1848
        %v1957 = vunpack.c.l.b16 %v1849
        %v1958 = vunpack.c.l.b16 %v1850
        %v1959 = vunpack.c.l.b16 %v1851
        %v1960 = vunpack.c.l.b16 %v1852
        %v1961 = vunpack.c.l.b16 %v1853
        %v1962 = vunpack.c.l.b16 %v1854
        %v1963 = vunpack.c.l.b16 %v1855
        %v1964 = vunpack.c.l.b16 %v1856
        %v1965 = vunpack.c.l.b16 %v1857
        %v1966 = vunpack.c.l.b16 %v1858
        %v1967 = vunpack.c.l.b16 %v1859
        %v1968 = vpack.c.b16 %v1945, %v1944
        %v1969 = vpack.c.b16 %v1947, %v1946
        %v1970 = vpack.c.b16 %v1949, %v1948
        %v1971 = vpack.c.b16 %v1951, %v1950
        %v1972 = vpack.c.b16 %v1953, %v1952
        %v1973 = vpack.c.b16 %v1955, %v1954
        %v1974 = vpack.c.b16 %v1957, %v1956
        %v1975 = vpack.c.b16 %v1959, %v1958
        %v1976 = vpack.c.b16 %v1961, %v1960
        %v1977 = vpack.c.b16 %v1963, %v1962
        %v1978 = vpack.c.b16 %v1965, %v1964
        %v1979 = vpack.c.b16 %v1967, %v1966
        %v1993 = vsel %vm1074, %v1835, 0
        %1995 = vmatprep.subr.bf16.mxu0 0
        %1996 = vmatpush1.bf16.msra.mxu0 %v1975
        %1997 = vmatprep.subr.bf16.mxu0 0
        %1998 = vmatpush1.bf16.msra.mxu0 %v1974
        %1999 = vmatprep.subr.bf16.mxu0 0
        %2000 = vmatpush1.bf16.msra.mxu0 %v1973
        %2001 = vmatprep.subr.bf16.mxu0 0
        %2002 = vmatpush1.bf16.msra.mxu0 %v1972
        %2003 = vmatprep.subr.bf16.mxu0 0
        %2004 = vmatpush1.bf16.msra.mxu0 %v1971
        %2005 = vmatprep.subr.bf16.mxu0 0
        %2006 = vmatpush1.bf16.msra.mxu0 %v1970
        %2007 = vmatprep.subr.bf16.mxu0 0
        %2008 = vmatpush1.bf16.msra.mxu0 %v1969
        %2009 = vmatprep.subr.bf16.mxu0 0
        %2010 = vmatpush1.bf16.msra.mxu0 %v1968
        %2011 = vmatprep.subr.bf16.mxu0 0
        %2012 = vmatpush2.bf16.msra.mxu0 0
        %2013 = vmatprep.subr.bf16.mxu0 0
        %2014 = vmatpush2.bf16.msra.mxu0 0
        %2015 = vmatprep.subr.bf16.mxu0 0
        %2016 = vmatpush2.bf16.msra.mxu0 0
        %2017 = vmatprep.subr.bf16.mxu0 0
        %2018 = vmatpush2.bf16.msra.mxu0 0
        %2019 = vmatprep.subr.bf16.mxu0 0
        %2020 = vmatpush2.bf16.msra.mxu0 %v1979
        %2021 = vmatprep.subr.bf16.mxu0 0
        %2022 = vmatpush2.bf16.msra.mxu0 %v1978
        %2023 = vmatprep.subr.bf16.mxu0 0
        %2024 = vmatpush2.bf16.msra.mxu0 %v1977
        %2025 = vmatprep.subr.bf16.mxu0 0
        %2026 = vmatpush2.bf16.msra.mxu0 %v1976
        %2027 = vmatprep.mubr.bf16.mxu0 %v1993
        %2028 = vmatmul.mubr.bf16.gmra.mxu0 %v1834
        %v2029 = vpop.f32.mrf.mxu0
        %v2030 = vadd.f32 %v1915, %v2029
        %v2031 = vpop.f32.mrf.mxu0
        %v2032 = vpop.f32.mrf.mxu0
        %v2033 = vpop.f32.mrf.mxu0
        %2034 = vdwg.mxu0
        %v2035 = vpack.c.bf16 %v1190, %v1190
        %v2036 = vld [vmem:[%s839] sm:$0xf]
        %v2037 = vld [vmem:[%s839 + $0x4] sm:$0xf]
        %v2038 = vld [vmem:[%s839 + $0x8] sm:$0xf]
        %v2039 = vld [vmem:[%s839 + $0xc] sm:$0xf]
        %v2044 = vunpack.c.l.b16 %v2036
        %v2045 = vunpack.c.l.b16 %v2037
        %v2046 = vunpack.c.l.b16 %v2038
        %v2047 = vunpack.c.l.b16 %v2039
        %v2048 = vpack.c.b16 %v2045, %v2044
        %v2049 = vpack.c.b16 %v2047, %v2046
        %v2053 = vsel %vm1406, %v2035, 0
        %2055 = vmatprep.subr.bf16.mxu0 0
        %2056 = vmatpush1.bf16.msra.mxu0 0
        %2057 = vmatprep.subr.bf16.mxu0 0
        %2058 = vmatpush1.bf16.msra.mxu0 0
        %2059 = vmatprep.subr.bf16.mxu0 0
        %2060 = vmatpush1.bf16.msra.mxu0 0
        %2061 = vmatprep.subr.bf16.mxu0 0
        %2062 = vmatpush1.bf16.msra.mxu0 0
        %2063 = vmatprep.subr.bf16.mxu0 0
        %2064 = vmatpush1.bf16.msra.mxu0 0
        %2065 = vmatprep.subr.bf16.mxu0 0
        %2066 = vmatpush1.bf16.msra.mxu0 0
        %2067 = vmatprep.subr.bf16.mxu0 0
        %2068 = vmatpush1.bf16.msra.mxu0 %v2049
        %2069 = vmatprep.subr.bf16.mxu0 0
        %2070 = vmatpush1.bf16.msra.mxu0 %v2048
        %2071 = vmatprep.subr.bf16.mxu0 0
        %2072 = vmatpush2.bf16.msra.mxu0 0
        %2073 = vmatprep.subr.bf16.mxu0 0
        %2074 = vmatpush2.bf16.msra.mxu0 0
        %2075 = vmatprep.subr.bf16.mxu0 0
        %2076 = vmatpush2.bf16.msra.mxu0 0
        %2077 = vmatprep.subr.bf16.mxu0 0
        %2078 = vmatpush2.bf16.msra.mxu0 0
        %2079 = vmatprep.subr.bf16.mxu0 0
        %2080 = vmatpush2.bf16.msra.mxu0 0
        %2081 = vmatprep.subr.bf16.mxu0 0
        %2082 = vmatpush2.bf16.msra.mxu0 0
        %2083 = vmatprep.subr.bf16.mxu0 0
        %2084 = vmatpush2.bf16.msra.mxu0 0
        %2085 = vmatprep.subr.bf16.mxu0 0
        %2086 = vmatpush2.bf16.msra.mxu0 0
        %2087 = vmatprep.mubr.bf16.mxu0 0
        %2088 = vmatmul.mubr.bf16.gmra.mxu0 %v2053
        %v2089 = vpop.f32.mrf.mxu0
        %v2090 = vadd.f32 0.0, %v2089
        %v2091 = vpop.f32.mrf.mxu0
        %v2092 = vpop.f32.mrf.mxu0
        %v2093 = vpop.f32.mrf.mxu0
        %2094 = vdwg.mxu0
        %v2095 = vadd.f32 %v2030, %v2090
        %v2096 = vld [vmem:[%s997] sm:$0x1]
        %v2098 = vlaneseq
        %v2099 = vshrl.u32 %v2098, 7
        %v2100 = vsub.s32 0, %v2099
        %v2101 = vrot.slane %v2096, %v2100
        %v2103 = vadd.f32 %v2095, %v2101
        %v2104 = vxor.u32 %v2103, 2147483648
        %v2105 = vmul.f32 %v2104, 1.442695
        %v2106 = vpow.pop %v2105
        %v2107 = vadd.f32 %v2106, 1.0
        %v2108 = vrcp.pop %v2107
        %v2109 = vmul.f32 1.0, %v2108
        %v2110 = vpack.c.bf16 %v2109, %v2109
        %v2111 = vld [vmem:[%s1002] sm:$0xf]
        %v2112 = vld [vmem:[%s1002 + $0x4] sm:$0xf]
        %v2113 = vld [vmem:[%s1002 + $0x8] sm:$0xf]
        %v2114 = vld [vmem:[%s1002 + $0xc] sm:$0xf]
        %v2115 = vld [vmem:[%s1002 + $0x10] sm:$0xf]
        %v2116 = vld [vmem:[%s1002 + $0x14] sm:$0xf]
        %v2117 = vld [vmem:[%s1002 + $0x18] sm:$0xf]
        %v2118 = vld [vmem:[%s1002 + $0x1c] sm:$0xf]
        %v2119 = vld [vmem:[%s1002 + $0x20] sm:$0xf]
        %v2120 = vld [vmem:[%s1002 + $0x24] sm:$0xf]
        %v2121 = vld [vmem:[%s1002 + $0x28] sm:$0xf]
        %v2122 = vld [vmem:[%s1002 + $0x2c] sm:$0xf]
        %v2123 = vld [vmem:[%s1002 + $0x30] sm:$0xf]
        %v2124 = vld [vmem:[%s1002 + $0x34] sm:$0xf]
        %v2125 = vld [vmem:[%s1002 + $0x38] sm:$0xf]
        %v2126 = vld [vmem:[%s1002 + $0x3c] sm:$0xf]
        %v2127 = vld [vmem:[%s1005] sm:$0x1]
        %v2129 = vlaneseq
        %v2130 = vshrl.u32 %v2129, 7
        %v2131 = vsub.s32 0, %v2130
        %v2132 = vrot.slane %v2127, %v2131
        %v2150 = vunpack.c.l.b16 %v2111
        %v2151 = vunpack.c.l.b16 %v2112
        %v2152 = vunpack.c.l.b16 %v2113
        %v2153 = vunpack.c.l.b16 %v2114
        %v2154 = vunpack.c.l.b16 %v2115
        %v2155 = vunpack.c.l.b16 %v2116
        %v2156 = vunpack.c.l.b16 %v2117
        %v2157 = vunpack.c.l.b16 %v2118
        %v2158 = vunpack.c.l.b16 %v2119
        %v2159 = vunpack.c.l.b16 %v2120
        %v2160 = vunpack.c.l.b16 %v2121
        %v2161 = vunpack.c.l.b16 %v2122
        %v2162 = vunpack.c.l.b16 %v2123
        %v2163 = vunpack.c.l.b16 %v2124
        %v2164 = vunpack.c.l.b16 %v2125
        %v2165 = vunpack.c.l.b16 %v2126
        %v2166 = vpack.c.b16 %v2151, %v2150
        %v2167 = vpack.c.b16 %v2153, %v2152
        %v2168 = vpack.c.b16 %v2155, %v2154
        %v2169 = vpack.c.b16 %v2157, %v2156
        %v2170 = vpack.c.b16 %v2159, %v2158
        %v2171 = vpack.c.b16 %v2161, %v2160
        %v2172 = vpack.c.b16 %v2163, %v2162
        %v2173 = vpack.c.b16 %v2165, %v2164
        %2182 = vmatprep.subr.bf16.mxu0 0
        %2183 = vmatpush1.bf16.msra.mxu0 %v2173
        %2184 = vmatprep.subr.bf16.mxu0 0
        %2185 = vmatpush1.bf16.msra.mxu0 %v2172
        %2186 = vmatprep.subr.bf16.mxu0 0
        %2187 = vmatpush1.bf16.msra.mxu0 %v2171
        %2188 = vmatprep.subr.bf16.mxu0 0
        %2189 = vmatpush1.bf16.msra.mxu0 %v2170
        %2190 = vmatprep.subr.bf16.mxu0 0
        %2191 = vmatpush1.bf16.msra.mxu0 %v2169
        %2192 = vmatprep.subr.bf16.mxu0 0
        %2193 = vmatpush1.bf16.msra.mxu0 %v2168
        %2194 = vmatprep.subr.bf16.mxu0 0
        %2195 = vmatpush1.bf16.msra.mxu0 %v2167
        %2196 = vmatprep.subr.bf16.mxu0 0
        %2197 = vmatpush1.bf16.msra.mxu0 %v2166
        %2198 = vmatprep.subr.bf16.mxu0 0
        %2199 = vmatpush2.bf16.msra.mxu0 0
        %2200 = vmatprep.subr.bf16.mxu0 0
        %2201 = vmatpush2.bf16.msra.mxu0 0
        %2202 = vmatprep.subr.bf16.mxu0 0
        %2203 = vmatpush2.bf16.msra.mxu0 0
        %2204 = vmatprep.subr.bf16.mxu0 0
        %2205 = vmatpush2.bf16.msra.mxu0 0
        %2206 = vmatprep.subr.bf16.mxu0 0
        %2207 = vmatpush2.bf16.msra.mxu0 0
        %2208 = vmatprep.subr.bf16.mxu0 0
        %2209 = vmatpush2.bf16.msra.mxu0 0
        %2210 = vmatprep.subr.bf16.mxu0 0
        %2211 = vmatpush2.bf16.msra.mxu0 0
        %2212 = vmatprep.subr.bf16.mxu0 0
        %2213 = vmatpush2.bf16.msra.mxu0 0
        %2214 = vmatprep.mubr.bf16.mxu0 0
        %2215 = vmatmul.mubr.bf16.gmra.mxu0 %v2110
        %v2216 = vpop.f32.mrf.mxu0
        %v2217 = vadd.f32 %v2132, %v2216
        %v2218 = vpop.f32.mrf.mxu0
        %v2219 = vpop.f32.mrf.mxu0
        %v2220 = vpop.f32.mrf.mxu0
        %2221 = vdwg.mxu0
        %2222 = vst.msk [vmem:[%s963] sm:$0xff] %vm1406, %v2217
        %s2223 = sand.u32 %s520, 1
        %s2224 = scalar_lea.sflag [#allocation6], %s2223
        %s2225 = sand.u32 %s520, 1
        %s2226 = smul.addr %s2225, 8
        %s2227 = scalar_lea.vmem [#allocation16], %s2226
        // Predicated region
        $region135: #{tpu_custom_call.1} parent=91 // pred_check
          %p2228 = pneg %p530
        $region136: #{tpu_custom_call.1} parent=91 // pred_check_branch
          %2230 = sbr.rel (%p2228) target = $region138
        $region137: #{tpu_custom_call.1} parent=91 // pred_region
          %s2232 = ssub.s32 128, 128
          %2233 = vsyncadd %s2224, %s2232
          %s2234 = smul.addr %s44, 128
          %s2235 = scalar_lea.hbm %s18, %s2234
          %s2237 = sshll.u32 %s2227, 4
          %s2238 = int_to_ptr.vmem [resolvable:$true] %s2237
          %2240 = dma.vmem_to_hbm [thread:$0]  %s2238, 128, %s2235, %s2224
        $region138: #{tpu_custom_call.1} parent=91 // pred_fallthru
          _
      $region92: #{tpu_custom_call.1} parent=5 // pred_fallthru
        _
      %p2241 = scmp.le.s32.totalorder 2, %s39
      // Predicated region
      $region139: #{tpu_custom_call.1} parent=5 // pred_check
        %p2242 = pneg %p2241
      $region140: #{tpu_custom_call.1} parent=5 // pred_check_branch
        %2244 = sbr.rel (%p2242) target = $region142
      $region141: #{tpu_custom_call.1} parent=5 // pred_region
        %s2245 = ssub.s32 %s39, 2
        // Predicated region
        $region143: #{tpu_custom_call.1} parent=141 // pred_check
          %p2246 = pneg %p536
        $region144: #{tpu_custom_call.1} parent=141 // pred_check_branch
          %2248 = sbr.rel (%p2246) target = $region146
        $region145: #{tpu_custom_call.1} parent=141 // pred_region
          %s2249 = sand.u32 %s521, 1
          %s2250 = scalar_lea.sflag [#allocation6], %s2249
          %s2251 = sand.u32 %s521, 1
          %s2252 = smul.addr %s2251, 8
          %s2253 = scalar_lea.vmem [#allocation16], %s2252
          %2254 = dma.done %s2250, 128
        $region146: #{tpu_custom_call.1} parent=141 // pred_fallthru
          _
      $region142: #{tpu_custom_call.1} parent=5 // pred_fallthru
        _
    $region6: #{tpu_custom_call.1} parent=1 // loop_footer
      %s43 = sadd.s32 1, %s39
    $region7: #{tpu_custom_call.1} parent=1 // loop_footer_branch
      %38 = sbr.rel target = $region3
    $region8: #{tpu_custom_call.1} parent=1 // loop_exit
      _
    %2255 = vsyncpa [#allocation5], 1
    %s2256 = scalar_lea.sflag [#allocation5], 1
    %2257 = vsyncpa %s2256, 1
    %2258 = vsyncpa [#allocation8], 1
    %s2259 = scalar_lea.sflag [#allocation8], 1
    %2260 = vsyncpa %s2259, 1
    %2261 = vsyncpa [#allocation11], 1
    %s2262 = scalar_lea.sflag [#allocation11], 1
    %2263 = vsyncpa %s2262, 1
    %2264 = vsyncpa [#allocation14], 1
    %s2265 = scalar_lea.sflag [#allocation14], 1
    %2266 = vsyncpa %s2265, 1
    %2267 = vsyncpa [#allocation6], 1
    %s2268 = scalar_lea.sflag [#allocation6], 1
    %2269 = vsyncpa %s2268, 1

</llo_original>
